<compile_context>
chip_gen: v5e
topology: v5e:2x2
jax: 0.10.0
libtpu: 0.0.40
codegen_flags: <defaults>
</compile_context>

<pallas_src>
import functools
import math

import numpy as np
import jax
import jax.numpy as jnp
from jax import lax
from jax.experimental import pallas as pl
from jax.experimental.pallas import tpu as pltpu


_VMEM_LIMIT_BYTES = 32 * 1024 * 1024  # within scoped budget on v5e/v6e/v7x


def _pick_tile(dim, candidates):
    """Largest candidate that evenly divides `dim`, else the full dim."""
    for c in candidates:
        if dim % c == 0:
            return c
    return dim


# ----------------------------------------------------------------------------
# Tiled, pipelined matmul (bf16 MXU inputs, f32 accumulation)
# ----------------------------------------------------------------------------
def _matmul_kernel(x_ref, w_ref, o_ref, acc_ref):
    @pl.when(pl.program_id(2) == 0)
    def _init():
        acc_ref[...] = jnp.zeros(acc_ref.shape, acc_ref.dtype)

    acc_ref[...] += jnp.dot(
        x_ref[...], w_ref[...], preferred_element_type=jnp.float32
    )

    @pl.when(pl.program_id(2) == pl.num_programs(2) - 1)
    def _done():
        o_ref[...] = acc_ref[...].astype(o_ref.dtype)


def pallas_matmul(x, w, out_dtype=jnp.float32):
    """x: (M, K), w: (K, N) -> (M, N) with f32 accumulation on the MXU."""
    m, k = x.shape
    k2, n = w.shape
    assert k == k2
    tm = _pick_tile(m, (512, 256, 128))
    tn = _pick_tile(n, (512, 256, 128))
    tk = _pick_tile(k, (1024, 512, 256, 128))
    grid = (m // tm, n // tn, k // tk)

    cost = pl.CostEstimate(
        flops=2 * m * n * k,
        transcendentals=0,
        bytes_accessed=(
            m * k * x.dtype.itemsize
            + k * n * w.dtype.itemsize
            + m * n * jnp.dtype(out_dtype).itemsize
        ),
    )
    return pl.pallas_call(
        _matmul_kernel,
        out_shape=jax.ShapeDtypeStruct((m, n), out_dtype),
        grid_spec=pltpu.PrefetchScalarGridSpec(
            num_scalar_prefetch=0,
            grid=grid,
            in_specs=[
                pl.BlockSpec((tm, tk), lambda i, j, kk: (i, kk)),
                pl.BlockSpec((tk, tn), lambda i, j, kk: (kk, j)),
            ],
            out_specs=pl.BlockSpec((tm, tn), lambda i, j, kk: (i, j)),
            scratch_shapes=[pltpu.VMEM((tm, tn), jnp.float32)],
        ),
        compiler_params=pltpu.CompilerParams(
            dimension_semantics=("parallel", "parallel", "arbitrary"),
            vmem_limit_bytes=_VMEM_LIMIT_BYTES,
        ),
        cost_estimate=cost,
    )(x, w)


# ----------------------------------------------------------------------------
# Flash-style causal attention with fused RoPE, all heads of a batch element
# per grid step, lane-dense (tq, n_heads*h_prim) output.
# ----------------------------------------------------------------------------
def _flash_attn_kernel(cos_q_ref, sin_q_ref, cos_k_ref, sin_k_ref, rot_ref,
                       q_ref, k_ref, v_ref, o_ref,
                       m_sc, l_sc, acc_sc,
                       *, scale, n_heads, h_prim, tq, tk, apply_rope):
    qi = pl.program_id(1)
    ki = pl.program_id(2)

    @pl.when(ki == 0)
    def _init():
        m_sc[...] = jnp.full(m_sc.shape, -1e30, m_sc.dtype)
        l_sc[...] = jnp.zeros(l_sc.shape, l_sc.dtype)
        acc_sc[...] = jnp.zeros(acc_sc.shape, acc_sc.dtype)

    # Skip kv tiles that lie entirely above the causal diagonal.
    @pl.when(ki * tk <= qi * tq + (tq - 1))
    def _compute():
        q = q_ref[0].astype(jnp.float32)          # (G, tq, d)
        k = k_ref[0].astype(jnp.float32)          # (G, tk, d)
        v = v_ref[0]                              # (G, tk, d) (input dtype)

        if apply_rope:
            # Fused RoPE: x*cos + (x @ R)*sin, where cos/sin are padded with
            # (1, 0) beyond n_rotate and R is the constant rotate_half matrix
            # (zero columns beyond n_rotate).
            rot_b = jnp.broadcast_to(rot_ref[...], (n_heads, h_prim, h_prim))

            def rope(x, cos, sin):
                comp = jnp.einsum("gld,gde->gle", x, rot_b,
                                  preferred_element_type=jnp.float32)
                return x * cos + comp * sin

            q = rope(q, cos_q_ref[...], sin_q_ref[...])
            k = rope(k, cos_k_ref[...], sin_k_ref[...])

        # Fold the softmax scale into Q (O(tq*d) instead of O(tq*tk)).
        q = (q * scale).astype(q_ref.dtype)
        k = k.astype(k_ref.dtype)

        s = jnp.einsum("gqd,gkd->gqk", q, k,
                       preferred_element_type=jnp.float32)   # (G, tq, tk)

        row = qi * tq + lax.broadcasted_iota(jnp.int32, s.shape, 1)
        col = ki * tk + lax.broadcasted_iota(jnp.int32, s.shape, 2)
        s = jnp.where(col <= row, s, -1e30)

        m_prev = m_sc[...]                                    # (G, tq, 1)
        m_new = jnp.maximum(m_prev, jnp.max(s, axis=-1, keepdims=True))
        alpha = jnp.exp(m_prev - m_new)
        p = jnp.exp(s - m_new)
        l_sc[...] = alpha * l_sc[...] + jnp.sum(p, axis=-1, keepdims=True)
        acc_sc[...] = alpha * acc_sc[...] + jnp.einsum(
            "gqk,gkd->gqd", p.astype(v.dtype), v,
            preferred_element_type=jnp.float32)
        m_sc[...] = m_new

    @pl.when(ki == pl.num_programs(2) - 1)
    def _finalize():
        out = acc_sc[...] * pl.reciprocal(l_sc[...], approx=True)  # (G, tq, d)
        # Write heads side-by-side -> output block (tq, G*d) already in the
        # W_O input layout (no XLA transpose needed downstream).
        for g in range(n_heads):
            o_ref[0, :, g * h_prim:(g + 1) * h_prim] = out[g].astype(o_ref.dtype)


def pallas_flash_attention(q, k, v, cos_f, sin_f, rot_mat, *, n_rotate,
                           out_dtype):
    """q, k, v: (B, n_heads, T, h_prim) -> (B, T, n_heads * h_prim)."""
    b, nh, t, d = q.shape
    tq = _pick_tile(t, (128, 64, 32, 16, 8))
    tk = _pick_tile(t, (128, 64, 32, 16, 8))
    grid = (b, t // tq, t // tk)

    kernel = functools.partial(
        _flash_attn_kernel,
        scale=1.0 / math.sqrt(d),
        n_heads=nh, h_prim=d, tq=tq, tk=tk,
        apply_rope=n_rotate > 0,
    )
    cost = pl.CostEstimate(
        flops=4 * b * nh * t * t * d,
        transcendentals=b * nh * t * t,
        bytes_accessed=(
            3 * b * nh * t * d * q.dtype.itemsize
            + b * t * nh * d * jnp.dtype(out_dtype).itemsize
        ),
    )
    return pl.pallas_call(
        kernel,
        out_shape=jax.ShapeDtypeStruct((b, t, nh * d), out_dtype),
        grid_spec=pltpu.PrefetchScalarGridSpec(
            num_scalar_prefetch=0,
            grid=grid,
            in_specs=[
                pl.BlockSpec((tq, d), lambda bb, qi, ki: (qi, 0)),   # cos (q)
                pl.BlockSpec((tq, d), lambda bb, qi, ki: (qi, 0)),   # sin (q)
                pl.BlockSpec((tk, d), lambda bb, qi, ki: (ki, 0)),   # cos (k)
                pl.BlockSpec((tk, d), lambda bb, qi, ki: (ki, 0)),   # sin (k)
                pl.BlockSpec((d, d), lambda bb, qi, ki: (0, 0)),     # rot mat
                pl.BlockSpec((1, nh, tq, d), lambda bb, qi, ki: (bb, 0, qi, 0)),
                pl.BlockSpec((1, nh, tk, d), lambda bb, qi, ki: (bb, 0, ki, 0)),
                pl.BlockSpec((1, nh, tk, d), lambda bb, qi, ki: (bb, 0, ki, 0)),
            ],
            out_specs=pl.BlockSpec((1, tq, nh * d),
                                   lambda bb, qi, ki: (bb, qi, 0)),
            scratch_shapes=[
                pltpu.VMEM((nh, tq, 1), jnp.float32),   # running max
                pltpu.VMEM((nh, tq, 1), jnp.float32),   # running sum
                pltpu.VMEM((nh, tq, d), jnp.float32),   # accumulator
            ],
        ),
        compiler_params=pltpu.CompilerParams(
            dimension_semantics=("parallel", "parallel", "arbitrary"),
            vmem_limit_bytes=_VMEM_LIMIT_BYTES,
        ),
        cost_estimate=cost,
    )(cos_f, sin_f, cos_f, sin_f, rot_mat, q, k, v)


# ----------------------------------------------------------------------------
# RoPE tables (plain JAX, shape-only constants)
# ----------------------------------------------------------------------------
def _rope_tables(t_len, h_prim, n_rotate, base):
    """cos/sin padded to full h_prim width (cos=1, sin=0 beyond n_rotate)."""
    cos_f = jnp.ones((t_len, h_prim), jnp.float32)
    sin_f = jnp.zeros((t_len, h_prim), jnp.float32)
    if n_rotate > 0:
        inv_freq = 1.0 / (
            base ** (jnp.arange(0, n_rotate, 2, dtype=jnp.float32) / n_rotate)
        )
        pos = jnp.arange(t_len, dtype=jnp.float32)
        freqs = jnp.einsum("i,j->ij", pos, inv_freq)       # (T, n_rotate/2)
        emb = jnp.concatenate([freqs, freqs], axis=-1)      # (T, n_rotate)
        cos_f = cos_f.at[:, :n_rotate].set(jnp.cos(emb))
        sin_f = sin_f.at[:, :n_rotate].set(jnp.sin(emb))
    return cos_f, sin_f


def _rope_rotation_matrix(h_prim, n_rotate):
    """Constant R with (x @ R)[i] == rotate_half(x[:n_rotate])[i] (0 beyond)."""
    R = np.zeros((h_prim, h_prim), np.float32)
    half = n_rotate // 2
    for i in range(half):
        R[i + half, i] = -1.0      # companion[i] = -x[i + half]
    for i in range(half, n_rotate):
        R[i - half, i] = 1.0       # companion[i] =  x[i - half]
    return jnp.asarray(R)


# ----------------------------------------------------------------------------
# Parameters & forward
# ----------------------------------------------------------------------------
def init_params(key, h, h_prim, n_heads):
    """nn.Linear-style init (uniform +/- 1/sqrt(fan_in)); weights as (in, out)."""
    k1, k2 = jax.random.split(key)
    lim_qkv = 1.0 / math.sqrt(h)
    w_qkv = jax.random.uniform(
        k1, (h, 3 * h_prim * n_heads), jnp.float32, -lim_qkv, lim_qkv)
    lim_o = 1.0 / math.sqrt(h_prim * n_heads)
    w_o = jax.random.uniform(
        k2, (h_prim * n_heads, h), jnp.float32, -lim_o, lim_o)
    return w_qkv, w_o


def mosa_forward(x, w_qkv, w_o, *, h_prim, n_heads, rotate_fraction, rope_base,
                 compute_dtype=jnp.bfloat16):
    """MoSA forward with num_mosa_heads=0, hybrid_type='dense'.

    MXU inputs are cast to `compute_dtype` (bf16 by default) with f32
    accumulation everywhere; softmax / RoPE elementwise math stays in f32.
    """
    b, t, h = x.shape

    n_rotate = int(rotate_fraction * h_prim)
    n_rotate -= n_rotate % 2

    xc = x.astype(compute_dtype)
    wq = w_qkv.astype(compute_dtype)
    wo = w_o.astype(compute_dtype)

    # QKV projection (tiled Pallas matmul).
    qkv = pallas_matmul(xc.reshape(b * t, h), wq, out_dtype=compute_dtype)
    qkv = qkv.reshape(b, t, n_heads, 3 * h_prim).transpose(0, 2, 1, 3)
    q = qkv[..., :h_prim]              # (b, H, T, h')
    k = qkv[..., h_prim:2 * h_prim]
    v = qkv[..., 2 * h_prim:]

    cos_f, sin_f = _rope_tables(t, h_prim, n_rotate, rope_base)
    rot = _rope_rotation_matrix(h_prim, n_rotate)

    # Flash attention with fused RoPE; output is (b, T, H*h') -- already the
    # W_O input layout (no transpose).
    av = pallas_flash_attention(q, k, v, cos_f, sin_f, rot,
                                n_rotate=n_rotate, out_dtype=compute_dtype)

    # Output projection (tiled Pallas matmul), final result in f32.
    out = pallas_matmul(av.reshape(b * t, n_heads * h_prim), wo,
                        out_dtype=jnp.float32)

    # mosa_heads contributes 0 (num_mosa_heads == 0).
    return out.reshape(b, t, h)


# ----------------------------------------------------------------------------
# Plain-JAX f32 reference (independent formulation, for a loose self-check)
# ----------------------------------------------------------------------------
def _reference_rope(q, k, base):
    n_rot = q.shape[-1]
    t_len = q.shape[-2]
    inv_freq = 1.0 / (base ** (jnp.arange(0, n_rot, 2, dtype=jnp.float32) / n_rot))
    pos = jnp.arange(t_len, dtype=jnp.float32)
    freqs = jnp.einsum("i,j->ij", pos, inv_freq)
    emb = jnp.concatenate([freqs, freqs], axis=-1)
    cos = jnp.cos(emb)[None, None]
    sin = jnp.sin(emb)[None, None]

    def rotate_half(x):
        x1, x2 = jnp.split(x, 2, axis=-1)
        return jnp.concatenate([-x2, x1], axis=-1)

    return q * cos + rotate_half(q) * sin, k * cos + rotate_half(k) * sin


def mosa_reference(x, w_qkv, w_o, *, h_prim, n_heads, rotate_fraction, rope_base):
    b, t, h = x.shape
    n_rotate = int(rotate_fraction * h_prim)
    n_rotate -= n_rotate % 2
    qkv = (x.reshape(b * t, h) @ w_qkv).reshape(b, t, n_heads, 3 * h_prim)
    qkv = qkv.transpose(0, 2, 1, 3)
    q = qkv[..., :h_prim]
    k = qkv[..., h_prim:2 * h_prim]
    v = qkv[..., 2 * h_prim:]
    if n_rotate > 0:
        r_q, nr_q = q[..., :n_rotate], q[..., n_rotate:]
        r_k, nr_k = k[..., :n_rotate], k[..., n_rotate:]
        r_q, r_k = _reference_rope(r_q, r_k, rope_base)
        q = jnp.concatenate([r_q, nr_q], axis=-1)
        k = jnp.concatenate([r_k, nr_k], axis=-1)
    s = jnp.einsum("bhqd,bhkd->bhqk", q, k) / math.sqrt(h_prim)
    mask = jnp.tril(jnp.ones((t, t), dtype=bool))
    s = jnp.where(mask, s, -jnp.inf)
    p = jax.nn.softmax(s, axis=-1)
    av = jnp.einsum("bhqk,bhkd->bhqd", p, v)
    av = av.transpose(0, 2, 1, 3).reshape(b * t, n_heads * h_prim)
    return (av @ w_o).reshape(b, t, h)


# ----------------------------------------------------------------------------
# Demo
# ----------------------------------------------------------------------------
if __name__ == "__main__":
    H = 32          # hidden size h
    H_PRIM = 8      # per-head dim h'
    N_HEADS = 2     # num_other_heads (dense heads)
    B = 2           # batch
    T = 8           # seq len (== max_seq_len)
    ROTATE_FRACTION = 0.5
    ROPE_BASE = 10000.0

    key = jax.random.PRNGKey(0)
    k_x, k_w = jax.random.split(key)
    x = jax.random.normal(k_x, (B, T, H), dtype=jnp.float32)
    w_qkv, w_o = init_params(k_w, H, H_PRIM, N_HEADS)

    fwd = jax.jit(
        functools.partial(
            mosa_forward,
            h_prim=H_PRIM,
            n_heads=N_HEADS,
            rotate_fraction=ROTATE_FRACTION,
            rope_base=ROPE_BASE,
        )
    )
    out = fwd(x, w_qkv, w_o)
    jax.block_until_ready(out)
    assert out.shape == (B, T, H) and out.dtype == jnp.float32

    # Loose self-check against the plain-JAX f32 reference (kernels use bf16
    # MXU inputs with f32 accumulation, so allow a small tolerance).
    ref = mosa_reference(x, w_qkv, w_o, h_prim=H_PRIM, n_heads=N_HEADS,
                         rotate_fraction=ROTATE_FRACTION, rope_base=ROPE_BASE)
    max_err = float(jnp.max(jnp.abs(out - ref)))
    assert max_err < 5e-2, f"max abs error vs reference: {max_err}"

    print("KERNEL_OK")
</pallas_src>

<mosaic_0001>
module attributes {stable_mosaic.version = 11 : i64} {
  func.func @_matmul_kernel(%arg0: i32, %arg1: i32, %arg2: i32, %arg3: memref<16x32xbf16, #tpu.memory_space<vmem>>, %arg4: memref<32x48xbf16, #tpu.memory_space<vmem>>, %arg5: memref<16x48xbf16, #tpu.memory_space<vmem>>, %arg6: memref<16x48xf32, #tpu.memory_space<vmem>>) attributes {dimension_semantics = [#tpu.dimension_semantics<parallel>, #tpu.dimension_semantics<parallel>, #tpu.dimension_semantics<arbitrary>], iteration_bounds = array<i64: 1, 1, 1>, scalar_prefetch = 0 : i64, scratch_operands = 1 : i64, tpu.core_type = #tpu.core_type<tc>, window_params = [{transform_indices = @transform_0, window_bounds = array<i64: 16, 32>}, {transform_indices = @transform_1, window_bounds = array<i64: 32, 48>}, {transform_indices = @transform_2, window_bounds = array<i64: 16, 48>}]} {
    %c0_i32 = arith.constant 0 : i32
    %0 = arith.cmpi eq, %arg2, %c0_i32 : i32
    %1 = arith.extui %0 : i1 to i32
    %c0_i32_0 = arith.constant 0 : i32
    %2 = arith.cmpi ne, %1, %c0_i32_0 : i32
    scf.if %2 {
      %cst_10 = arith.constant 0.000000e+00 : f32
      %12 = vector.broadcast %cst_10 : f32 to vector<16x48xf32>
      %c0_11 = arith.constant 0 : index
      %c0_12 = arith.constant 0 : index
      %13 = vector.load %arg6[%c0_11, %c0_12] : memref<16x48xf32, #tpu.memory_space<vmem>>, vector<16x48xf32>
      tpu.vector_store %arg6[%c0_11, %c0_12], %12 {strides = array<i32>} : memref<16x48xf32, #tpu.memory_space<vmem>>, vector<16x48xf32>,
    } else {
    }
    %c0 = arith.constant 0 : index
    %c0_1 = arith.constant 0 : index
    %3 = vector.load %arg6[%c0, %c0_1] : memref<16x48xf32, #tpu.memory_space<vmem>>, vector<16x48xf32>
    %c0_2 = arith.constant 0 : index
    %c0_3 = arith.constant 0 : index
    %4 = vector.load %arg3[%c0_2, %c0_3] : memref<16x32xbf16, #tpu.memory_space<vmem>>, vector<16x32xbf16>
    %c0_4 = arith.constant 0 : index
    %c0_5 = arith.constant 0 : index
    %5 = vector.load %arg4[%c0_4, %c0_5] : memref<32x48xbf16, #tpu.memory_space<vmem>>, vector<32x48xbf16>
    %cst = arith.constant dense<0.000000e+00> : vector<16x48xf32>
    %6 = tpu.matmul %4, %5, %cst {dimension_numbers = #tpu.dot_dimension_numbers<[1], [0], [0], [1], [0, 0, 1, 1], [], []>} : vector<16x32xbf16>, vector<32x48xbf16>, vector<16x48xf32> -> vector<16x48xf32>
    %7 = arith.addf %3, %6 : vector<16x48xf32>
    %c0_6 = arith.constant 0 : index
    %c0_7 = arith.constant 0 : index
    %8 = vector.load %arg6[%c0_6, %c0_7] : memref<16x48xf32, #tpu.memory_space<vmem>>, vector<16x48xf32>
    tpu.vector_store %arg6[%c0_6, %c0_7], %7 {strides = array<i32>} : memref<16x48xf32, #tpu.memory_space<vmem>>, vector<16x48xf32>,
    %c0_i32_8 = arith.constant 0 : i32
    %9 = arith.cmpi eq, %arg2, %c0_i32_8 : i32
    %10 = arith.extui %9 : i1 to i32
    %c0_i32_9 = arith.constant 0 : i32
    %11 = arith.cmpi ne, %10, %c0_i32_9 : i32
    scf.if %11 {
      %c0_10 = arith.constant 0 : index
      %c0_11 = arith.constant 0 : index
      %12 = vector.load %arg6[%c0_10, %c0_11] : memref<16x48xf32, #tpu.memory_space<vmem>>, vector<16x48xf32>
      %13 = arith.truncf %12 : vector<16x48xf32> to vector<16x48xbf16>
      %c0_12 = arith.constant 0 : index
      %c0_13 = arith.constant 0 : index
      %14 = vector.load %arg5[%c0_12, %c0_13] : memref<16x48xbf16, #tpu.memory_space<vmem>>, vector<16x48xbf16>
      tpu.vector_store %arg5[%c0_12, %c0_13], %13 {strides = array<i32>} : memref<16x48xbf16, #tpu.memory_space<vmem>>, vector<16x48xbf16>,
    } else {
    }
    return
  }
  func.func @transform_0(%arg0: i32, %arg1: i32, %arg2: i32) -> (i32, i32) {
    %c0_i32 = arith.constant 0 : i32
    return %arg0, %arg2 : i32, i32
  }
  func.func @transform_1(%arg0: i32, %arg1: i32, %arg2: i32) -> (i32, i32) {
    %c0_i32 = arith.constant 0 : i32
    return %arg2, %arg1 : i32, i32
  }
  func.func @transform_2(%arg0: i32, %arg1: i32, %arg2: i32) -> (i32, i32) {
    %c0_i32 = arith.constant 0 : i32
    return %arg0, %arg1 : i32, i32
  }
}

module attributes {stable_mosaic.version = 11 : i64} {
  func.func @_flash_attn_kernel(%arg0: i32, %arg1: i32, %arg2: i32, %arg3: memref<8x8xf32, #tpu.memory_space<vmem>>, %arg4: memref<8x8xf32, #tpu.memory_space<vmem>>, %arg5: memref<8x8xf32, #tpu.memory_space<vmem>>, %arg6: memref<8x8xf32, #tpu.memory_space<vmem>>, %arg7: memref<8x8xf32, #tpu.memory_space<vmem>>, %arg8: memref<1x2x8x8xbf16, #tpu.memory_space<vmem>>, %arg9: memref<1x2x8x8xbf16, #tpu.memory_space<vmem>>, %arg10: memref<1x2x8x8xbf16, #tpu.memory_space<vmem>>, %arg11: memref<1x8x16xbf16, #tpu.memory_space<vmem>>, %arg12: memref<2x8x1xf32, #tpu.memory_space<vmem>>, %arg13: memref<2x8x1xf32, #tpu.memory_space<vmem>>, %arg14: memref<2x8x8xf32, #tpu.memory_space<vmem>>) attributes {dimension_semantics = [#tpu.dimension_semantics<parallel>, #tpu.dimension_semantics<parallel>, #tpu.dimension_semantics<arbitrary>], iteration_bounds = array<i64: 2, 1, 1>, scalar_prefetch = 0 : i64, scratch_operands = 3 : i64, tpu.core_type = #tpu.core_type<tc>, window_params = [{transform_indices = @transform_0, window_bounds = array<i64: 8, 8>}, {transform_indices = @transform_1, window_bounds = array<i64: 8, 8>}, {transform_indices = @transform_2, window_bounds = array<i64: 8, 8>}, {transform_indices = @transform_3, window_bounds = array<i64: 8, 8>}, {pipeline_mode = #tpu.pipeline_mode<synchronous>, transform_indices = @transform_4, window_bounds = array<i64: 8, 8>}, {transform_indices = @transform_5, window_bounds = array<i64: 1, 2, 8, 8>}, {transform_indices = @transform_6, window_bounds = array<i64: 1, 2, 8, 8>}, {transform_indices = @transform_7, window_bounds = array<i64: 1, 2, 8, 8>}, {transform_indices = @transform_8, window_bounds = array<i64: 1, 8, 16>}]} {
    %c0_i32 = arith.constant 0 : i32
    %0 = arith.cmpi eq, %arg2, %c0_i32 : i32
    %1 = arith.extui %0 : i1 to i32
    %c0_i32_0 = arith.constant 0 : i32
    %2 = arith.cmpi ne, %1, %c0_i32_0 : i32
    scf.if %2 {
      %cst = arith.constant -1.000000e+30 : f32
      %12 = vector.broadcast %cst : f32 to vector<2x8x1xf32>
      %c0 = arith.constant 0 : index
      %c0_5 = arith.constant 0 : index
      %c0_6 = arith.constant 0 : index
      %13 = vector.load %arg12[%c0, %c0_5, %c0_6] : memref<2x8x1xf32, #tpu.memory_space<vmem>>, vector<2x8x1xf32>
      tpu.vector_store %arg12[%c0, %c0_5, %c0_6], %12 {strides = array<i32>} : memref<2x8x1xf32, #tpu.memory_space<vmem>>, vector<2x8x1xf32>,
      %cst_7 = arith.constant 0.000000e+00 : f32
      %14 = vector.broadcast %cst_7 : f32 to vector<2x8x1xf32>
      %c0_8 = arith.constant 0 : index
      %c0_9 = arith.constant 0 : index
      %c0_10 = arith.constant 0 : index
      %15 = vector.load %arg13[%c0_8, %c0_9, %c0_10] : memref<2x8x1xf32, #tpu.memory_space<vmem>>, vector<2x8x1xf32>
      tpu.vector_store %arg13[%c0_8, %c0_9, %c0_10], %14 {strides = array<i32>} : memref<2x8x1xf32, #tpu.memory_space<vmem>>, vector<2x8x1xf32>,
      %cst_11 = arith.constant 0.000000e+00 : f32
      %16 = vector.broadcast %cst_11 : f32 to vector<2x8x8xf32>
      %c0_12 = arith.constant 0 : index
      %c0_13 = arith.constant 0 : index
      %c0_14 = arith.constant 0 : index
      %17 = vector.load %arg14[%c0_12, %c0_13, %c0_14] : memref<2x8x8xf32, #tpu.memory_space<vmem>>, vector<2x8x8xf32>
      tpu.vector_store %arg14[%c0_12, %c0_13, %c0_14], %16 {strides = array<i32>} : memref<2x8x8xf32, #tpu.memory_space<vmem>>, vector<2x8x8xf32>,
    } else {
    }
    %c8_i32 = arith.constant 8 : i32
    %3 = arith.muli %arg2, %c8_i32 : i32
    %c8_i32_1 = arith.constant 8 : i32
    %4 = arith.muli %arg1, %c8_i32_1 : i32
    %c7_i32 = arith.constant 7 : i32
    %5 = arith.addi %4, %c7_i32 : i32
    %6 = arith.cmpi sle, %3, %5 : i32
    %7 = arith.extui %6 : i1 to i32
    %c0_i32_2 = arith.constant 0 : i32
    %8 = arith.cmpi ne, %7, %c0_i32_2 : i32
    scf.if %8 {
      %c0 = arith.constant 0 : index
      %c0_5 = arith.constant 0 : index
      %c0_6 = arith.constant 0 : index
      %c0_7 = arith.constant 0 : index
      %12 = vector.load %arg8[%c0, %c0_5, %c0_6, %c0_7] : memref<1x2x8x8xbf16, #tpu.memory_space<vmem>>, vector<1x2x8x8xbf16>
      %13 = vector.shape_cast %12 : vector<1x2x8x8xbf16> to vector<2x8x8xbf16>
      %14 = arith.extf %13 : vector<2x8x8xbf16> to vector<2x8x8xf32>
      %c0_8 = arith.constant 0 : index
      %c0_9 = arith.constant 0 : index
      %c0_10 = arith.constant 0 : index
      %c0_11 = arith.constant 0 : index
      %15 = vector.load %arg9[%c0_8, %c0_9, %c0_10, %c0_11] : memref<1x2x8x8xbf16, #tpu.memory_space<vmem>>, vector<1x2x8x8xbf16>
      %16 = vector.shape_cast %15 : vector<1x2x8x8xbf16> to vector<2x8x8xbf16>
      %17 = arith.extf %16 : vector<2x8x8xbf16> to vector<2x8x8xf32>
      %c0_12 = arith.constant 0 : index
      %c0_13 = arith.constant 0 : index
      %c0_14 = arith.constant 0 : index
      %c0_15 = arith.constant 0 : index
      %18 = vector.load %arg10[%c0_12, %c0_13, %c0_14, %c0_15] : memref<1x2x8x8xbf16, #tpu.memory_space<vmem>>, vector<1x2x8x8xbf16>
      %19 = vector.shape_cast %18 : vector<1x2x8x8xbf16> to vector<2x8x8xbf16>
      %c0_16 = arith.constant 0 : index
      %c0_17 = arith.constant 0 : index
      %20 = vector.load %arg7[%c0_16, %c0_17] : memref<8x8xf32, #tpu.memory_space<vmem>>, vector<8x8xf32>
      %21 = vector.shape_cast %20 : vector<8x8xf32> to vector<1x8x8xf32>
      %22 = vector.broadcast %21 : vector<1x8x8xf32> to vector<2x8x8xf32>
      %c0_18 = arith.constant 0 : index
      %c0_19 = arith.constant 0 : index
      %23 = vector.load %arg3[%c0_18, %c0_19] : memref<8x8xf32, #tpu.memory_space<vmem>>, vector<8x8xf32>
      %c0_20 = arith.constant 0 : index
      %c0_21 = arith.constant 0 : index
      %24 = vector.load %arg4[%c0_20, %c0_21] : memref<8x8xf32, #tpu.memory_space<vmem>>, vector<8x8xf32>
      "tpu.trace_start"() <{level = 10 : i32, message = "gld,gde->gle"}> : () -> ()
      %cst = arith.constant dense<0.000000e+00> : vector<2x8x8xf32>
      %25 = tpu.matmul %14, %22, %cst {dimension_numbers = #tpu.dot_dimension_numbers<[2], [1], [1], [2], [0, 0, 0, 1, 1, 2], [0], [0]>} : vector<2x8x8xf32>, vector<2x8x8xf32>, vector<2x8x8xf32> -> vector<2x8x8xf32>
      "tpu.trace_stop"() : () -> ()
      %26 = vector.shape_cast %23 : vector<8x8xf32> to vector<1x8x8xf32>
      %27 = vector.broadcast %26 : vector<1x8x8xf32> to vector<2x8x8xf32>
      %28 = arith.mulf %14, %27 : vector<2x8x8xf32>
      %29 = vector.shape_cast %24 : vector<8x8xf32> to vector<1x8x8xf32>
      %30 = vector.broadcast %29 : vector<1x8x8xf32> to vector<2x8x8xf32>
      %31 = arith.mulf %25, %30 : vector<2x8x8xf32>
      %32 = arith.addf %28, %31 : vector<2x8x8xf32>
      %c0_22 = arith.constant 0 : index
      %c0_23 = arith.constant 0 : index
      %33 = vector.load %arg5[%c0_22, %c0_23] : memref<8x8xf32, #tpu.memory_space<vmem>>, vector<8x8xf32>
      %c0_24 = arith.constant 0 : index
      %c0_25 = arith.constant 0 : index
      %34 = vector.load %arg6[%c0_24, %c0_25] : memref<8x8xf32, #tpu.memory_space<vmem>>, vector<8x8xf32>
      "tpu.trace_start"() <{level = 10 : i32, message = "gld,gde->gle"}> : () -> ()
      %cst_26 = arith.constant dense<0.000000e+00> : vector<2x8x8xf32>
      %35 = tpu.matmul %17, %22, %cst_26 {dimension_numbers = #tpu.dot_dimension_numbers<[2], [1], [1], [2], [0, 0, 0, 1, 1, 2], [0], [0]>} : vector<2x8x8xf32>, vector<2x8x8xf32>, vector<2x8x8xf32> -> vector<2x8x8xf32>
      "tpu.trace_stop"() : () -> ()
      %36 = vector.shape_cast %33 : vector<8x8xf32> to vector<1x8x8xf32>
      %37 = vector.broadcast %36 : vector<1x8x8xf32> to vector<2x8x8xf32>
      %38 = arith.mulf %17, %37 : vector<2x8x8xf32>
      %39 = vector.shape_cast %34 : vector<8x8xf32> to vector<1x8x8xf32>
      %40 = vector.broadcast %39 : vector<1x8x8xf32> to vector<2x8x8xf32>
      %41 = arith.mulf %35, %40 : vector<2x8x8xf32>
      %42 = arith.addf %38, %41 : vector<2x8x8xf32>
      %cst_27 = arith.constant 0.353553385 : f32
      %43 = vector.broadcast %cst_27 : f32 to vector<2x8x8xf32>
      %44 = arith.mulf %32, %43 : vector<2x8x8xf32>
      %45 = arith.truncf %44 : vector<2x8x8xf32> to vector<2x8x8xbf16>
      %46 = arith.truncf %42 : vector<2x8x8xf32> to vector<2x8x8xbf16>
      "tpu.trace_start"() <{level = 10 : i32, message = "gqd,gkd->gqk"}> : () -> ()
      %cst_28 = arith.constant dense<0.000000e+00> : vector<2x8x8xf32>
      %47 = tpu.matmul %45, %46, %cst_28 {dimension_numbers = #tpu.dot_dimension_numbers<[2], [2], [1], [1], [0, 0, 0, 1, 1, 1], [0], [0]>} : vector<2x8x8xbf16>, vector<2x8x8xbf16>, vector<2x8x8xf32> -> vector<2x8x8xf32>
      "tpu.trace_stop"() : () -> ()
      %c8_i32_29 = arith.constant 8 : i32
      %48 = arith.muli %arg1, %c8_i32_29 : i32
      %49 = tpu.iota {dimensions = array<i32: 1>} : vector<2x8x8xi32>
      %50 = vector.broadcast %48 : i32 to vector<2x8x8xi32>
      %51 = arith.addi %50, %49 : vector<2x8x8xi32>
      %c8_i32_30 = arith.constant 8 : i32
      %52 = arith.muli %arg2, %c8_i32_30 : i32
      %53 = tpu.iota {dimensions = array<i32: 2>} : vector<2x8x8xi32>
      %54 = vector.broadcast %52 : i32 to vector<2x8x8xi32>
      %55 = arith.addi %54, %53 : vector<2x8x8xi32>
      %56 = arith.cmpi sle, %55, %51 : vector<2x8x8xi32>
      %cst_31 = arith.constant -1.000000e+30 : f32
      %57 = vector.broadcast %cst_31 : f32 to vector<2x8x8xf32>
      %58 = arith.select %56, %47, %57 : vector<2x8x8xi1>, vector<2x8x8xf32>
      %c0_32 = arith.constant 0 : index
      %c0_33 = arith.constant 0 : index
      %c0_34 = arith.constant 0 : index
      %59 = vector.load %arg12[%c0_32, %c0_33, %c0_34] : memref<2x8x1xf32, #tpu.memory_space<vmem>>, vector<2x8x1xf32>
      %cst_35 = arith.constant dense<0xFF800000> : vector<2x8xf32>
      %60 = vector.multi_reduction <maximumf>, %58, %cst_35 [2] : vector<2x8x8xf32> to vector<2x8xf32>
      %61 = vector.shape_cast %60 : vector<2x8xf32> to vector<2x8x1xf32>
      %62 = arith.maximumf %59, %61 : vector<2x8x1xf32>
      %63 = arith.subf %59, %62 : vector<2x8x1xf32>
      %64 = math.exp %63 : vector<2x8x1xf32>
      %65 = vector.broadcast %62 : vector<2x8x1xf32> to vector<2x8x8xf32>
      %66 = arith.subf %58, %65 : vector<2x8x8xf32>
      %67 = math.exp %66 : vector<2x8x8xf32>
      %c0_36 = arith.constant 0 : index
      %c0_37 = arith.constant 0 : index
      %c0_38 = arith.constant 0 : index
      %68 = vector.load %arg13[%c0_36, %c0_37, %c0_38] : memref<2x8x1xf32, #tpu.memory_space<vmem>>, vector<2x8x1xf32>
      %69 = arith.mulf %64, %68 : vector<2x8x1xf32>
      %cst_39 = arith.constant dense<0.000000e+00> : vector<2x8xf32>
      %70 = vector.multi_reduction <add>, %67, %cst_39 [2] : vector<2x8x8xf32> to vector<2x8xf32>
      %71 = vector.shape_cast %70 : vector<2x8xf32> to vector<2x8x1xf32>
      %72 = arith.addf %69, %71 : vector<2x8x1xf32>
      %c0_40 = arith.constant 0 : index
      %c0_41 = arith.constant 0 : index
      %c0_42 = arith.constant 0 : index
      %73 = vector.load %arg13[%c0_40, %c0_41, %c0_42] : memref<2x8x1xf32, #tpu.memory_space<vmem>>, vector<2x8x1xf32>
      tpu.vector_store %arg13[%c0_40, %c0_41, %c0_42], %72 {strides = array<i32>} : memref<2x8x1xf32, #tpu.memory_space<vmem>>, vector<2x8x1xf32>,
      %c0_43 = arith.constant 0 : index
      %c0_44 = arith.constant 0 : index
      %c0_45 = arith.constant 0 : index
      %74 = vector.load %arg14[%c0_43, %c0_44, %c0_45] : memref<2x8x8xf32, #tpu.memory_space<vmem>>, vector<2x8x8xf32>
      %75 = vector.broadcast %64 : vector<2x8x1xf32> to vector<2x8x8xf32>
      %76 = arith.mulf %75, %74 : vector<2x8x8xf32>
      %77 = arith.truncf %67 : vector<2x8x8xf32> to vector<2x8x8xbf16>
      "tpu.trace_start"() <{level = 10 : i32, message = "gqk,gkd->gqd"}> : () -> ()
      %cst_46 = arith.constant dense<0.000000e+00> : vector<2x8x8xf32>
      %78 = tpu.matmul %77, %19, %cst_46 {dimension_numbers = #tpu.dot_dimension_numbers<[2], [1], [1], [2], [0, 0, 0, 1, 1, 2], [0], [0]>} : vector<2x8x8xbf16>, vector<2x8x8xbf16>, vector<2x8x8xf32> -> vector<2x8x8xf32>
      "tpu.trace_stop"() : () -> ()
      %79 = arith.addf %76, %78 : vector<2x8x8xf32>
      %c0_47 = arith.constant 0 : index
      %c0_48 = arith.constant 0 : index
      %c0_49 = arith.constant 0 : index
      %80 = vector.load %arg14[%c0_47, %c0_48, %c0_49] : memref<2x8x8xf32, #tpu.memory_space<vmem>>, vector<2x8x8xf32>
      tpu.vector_store %arg14[%c0_47, %c0_48, %c0_49], %79 {strides = array<i32>} : memref<2x8x8xf32, #tpu.memory_space<vmem>>, vector<2x8x8xf32>,
      %c0_50 = arith.constant 0 : index
      %c0_51 = arith.constant 0 : index
      %c0_52 = arith.constant 0 : index
      %81 = vector.load %arg12[%c0_50, %c0_51, %c0_52] : memref<2x8x1xf32, #tpu.memory_space<vmem>>, vector<2x8x1xf32>
      tpu.vector_store %arg12[%c0_50, %c0_51, %c0_52], %62 {strides = array<i32>} : memref<2x8x1xf32, #tpu.memory_space<vmem>>, vector<2x8x1xf32>,
    } else {
    }
    %c0_i32_3 = arith.constant 0 : i32
    %9 = arith.cmpi eq, %arg2, %c0_i32_3 : i32
    %10 = arith.extui %9 : i1 to i32
    %c0_i32_4 = arith.constant 0 : i32
    %11 = arith.cmpi ne, %10, %c0_i32_4 : i32
    scf.if %11 {
      %c0 = arith.constant 0 : index
      %c0_5 = arith.constant 0 : index
      %c0_6 = arith.constant 0 : index
      %12 = vector.load %arg14[%c0, %c0_5, %c0_6] : memref<2x8x8xf32, #tpu.memory_space<vmem>>, vector<2x8x8xf32>
      %c0_7 = arith.constant 0 : index
      %c0_8 = arith.constant 0 : index
      %c0_9 = arith.constant 0 : index
      %13 = vector.load %arg13[%c0_7, %c0_8, %c0_9] : memref<2x8x1xf32, #tpu.memory_space<vmem>>, vector<2x8x1xf32>
      %14 = tpu.reciprocal %13 {approx = true} : vector<2x8x1xf32> -> vector<2x8x1xf32>
      %15 = vector.broadcast %14 : vector<2x8x1xf32> to vector<2x8x8xf32>
      %16 = arith.mulf %12, %15 : vector<2x8x8xf32>
      %17 = vector.extract_strided_slice %16 {offsets = [0, 0, 0], sizes = [1, 8, 8], strides = [1, 1, 1]} : vector<2x8x8xf32> to vector<1x8x8xf32>
      %18 = vector.shape_cast %17 : vector<1x8x8xf32> to vector<8x8xf32>
      %19 = arith.truncf %18 : vector<8x8xf32> to vector<8x8xbf16>
      %c0_10 = arith.constant 0 : index
      %c0_11 = arith.constant 0 : index
      %c0_12 = arith.constant 0 : index
      %20 = vector.load %arg11[%c0_10, %c0_11, %c0_12] : memref<1x8x16xbf16, #tpu.memory_space<vmem>>, vector<1x8x8xbf16>
      %21 = vector.shape_cast %20 : vector<1x8x8xbf16> to vector<8x8xbf16>
      %22 = vector.shape_cast %19 : vector<8x8xbf16> to vector<1x8x8xbf16>
      tpu.vector_store %arg11[%c0_10, %c0_11, %c0_12], %22 {strides = array<i32>} : memref<1x8x16xbf16, #tpu.memory_space<vmem>>, vector<1x8x8xbf16>,
      %23 = vector.extract_strided_slice %16 {offsets = [1, 0, 0], sizes = [1, 8, 8], strides = [1, 1, 1]} : vector<2x8x8xf32> to vector<1x8x8xf32>
      %24 = vector.shape_cast %23 : vector<1x8x8xf32> to vector<8x8xf32>
      %25 = arith.truncf %24 : vector<8x8xf32> to vector<8x8xbf16>
      %c0_13 = arith.constant 0 : index
      %c0_14 = arith.constant 0 : index
      %c8 = arith.constant 8 : index
      %26 = vector.load %arg11[%c0_13, %c0_14, %c8] : memref<1x8x16xbf16, #tpu.memory_space<vmem>>, vector<1x8x8xbf16>
      %27 = vector.shape_cast %26 : vector<1x8x8xbf16> to vector<8x8xbf16>
      %28 = vector.shape_cast %25 : vector<8x8xbf16> to vector<1x8x8xbf16>
      tpu.vector_store %arg11[%c0_13, %c0_14, %c8], %28 {strides = array<i32>} : memref<1x8x16xbf16, #tpu.memory_space<vmem>>, vector<1x8x8xbf16>,
    } else {
    }
    return
  }
  func.func @transform_0(%arg0: i32, %arg1: i32, %arg2: i32) -> (i32, i32) {
    %c0_i32 = arith.constant 0 : i32
    %c0_i32_0 = arith.constant 0 : i32
    return %arg1, %c0_i32 : i32, i32
  }
  func.func @transform_1(%arg0: i32, %arg1: i32, %arg2: i32) -> (i32, i32) {
    %c0_i32 = arith.constant 0 : i32
    %c0_i32_0 = arith.constant 0 : i32
    return %arg1, %c0_i32 : i32, i32
  }
  func.func @transform_2(%arg0: i32, %arg1: i32, %arg2: i32) -> (i32, i32) {
    %c0_i32 = arith.constant 0 : i32
    %c0_i32_0 = arith.constant 0 : i32
    return %arg2, %c0_i32 : i32, i32
  }
  func.func @transform_3(%arg0: i32, %arg1: i32, %arg2: i32) -> (i32, i32) {
    %c0_i32 = arith.constant 0 : i32
    %c0_i32_0 = arith.constant 0 : i32
    return %arg2, %c0_i32 : i32, i32
  }
  func.func @transform_4(%arg0: i32, %arg1: i32, %arg2: i32) -> (i32, i32) {
    %c0_i32 = arith.constant 0 : i32
    %c0_i32_0 = arith.constant 0 : i32
    %c0_i32_1 = arith.constant 0 : i32
    return %c0_i32, %c0_i32_0 : i32, i32
  }
  func.func @transform_5(%arg0: i32, %arg1: i32, %arg2: i32) -> (i32, i32, i32, i32) {
    %c0_i32 = arith.constant 0 : i32
    %c0_i32_0 = arith.constant 0 : i32
    %c0_i32_1 = arith.constant 0 : i32
    return %arg0, %c0_i32, %arg1, %c0_i32_0 : i32, i32, i32, i32
  }
  func.func @transform_6(%arg0: i32, %arg1: i32, %arg2: i32) -> (i32, i32, i32, i32) {
    %c0_i32 = arith.constant 0 : i32
    %c0_i32_0 = arith.constant 0 : i32
    %c0_i32_1 = arith.constant 0 : i32
    return %arg0, %c0_i32, %arg2, %c0_i32_0 : i32, i32, i32, i32
  }
  func.func @transform_7(%arg0: i32, %arg1: i32, %arg2: i32) -> (i32, i32, i32, i32) {
    %c0_i32 = arith.constant 0 : i32
    %c0_i32_0 = arith.constant 0 : i32
    %c0_i32_1 = arith.constant 0 : i32
    return %arg0, %c0_i32, %arg2, %c0_i32_0 : i32, i32, i32, i32
  }
  func.func @transform_8(%arg0: i32, %arg1: i32, %arg2: i32) -> (i32, i32, i32) {
    %c0_i32 = arith.constant 0 : i32
    %c0_i32_0 = arith.constant 0 : i32
    return %arg0, %arg1, %c0_i32 : i32, i32, i32
  }
}

module attributes {stable_mosaic.version = 11 : i64} {
  func.func @_matmul_kernel(%arg0: i32, %arg1: i32, %arg2: i32, %arg3: memref<16x16xbf16, #tpu.memory_space<vmem>>, %arg4: memref<16x32xbf16, #tpu.memory_space<vmem>>, %arg5: memref<16x32xf32, #tpu.memory_space<vmem>>, %arg6: memref<16x32xf32, #tpu.memory_space<vmem>>) attributes {dimension_semantics = [#tpu.dimension_semantics<parallel>, #tpu.dimension_semantics<parallel>, #tpu.dimension_semantics<arbitrary>], iteration_bounds = array<i64: 1, 1, 1>, scalar_prefetch = 0 : i64, scratch_operands = 1 : i64, tpu.core_type = #tpu.core_type<tc>, window_params = [{transform_indices = @transform_0, window_bounds = array<i64: 16, 16>}, {transform_indices = @transform_1, window_bounds = array<i64: 16, 32>}, {transform_indices = @transform_2, window_bounds = array<i64: 16, 32>}]} {
    %c0_i32 = arith.constant 0 : i32
    %0 = arith.cmpi eq, %arg2, %c0_i32 : i32
    %1 = arith.extui %0 : i1 to i32
    %c0_i32_0 = arith.constant 0 : i32
    %2 = arith.cmpi ne, %1, %c0_i32_0 : i32
    scf.if %2 {
      %cst_10 = arith.constant 0.000000e+00 : f32
      %12 = vector.broadcast %cst_10 : f32 to vector<16x32xf32>
      %c0_11 = arith.constant 0 : index
      %c0_12 = arith.constant 0 : index
      %13 = vector.load %arg6[%c0_11, %c0_12] : memref<16x32xf32, #tpu.memory_space<vmem>>, vector<16x32xf32>
      tpu.vector_store %arg6[%c0_11, %c0_12], %12 {strides = array<i32>} : memref<16x32xf32, #tpu.memory_space<vmem>>, vector<16x32xf32>,
    } else {
    }
    %c0 = arith.constant 0 : index
    %c0_1 = arith.constant 0 : index
    %3 = vector.load %arg6[%c0, %c0_1] : memref<16x32xf32, #tpu.memory_space<vmem>>, vector<16x32xf32>
    %c0_2 = arith.constant 0 : index
    %c0_3 = arith.constant 0 : index
    %4 = vector.load %arg3[%c0_2, %c0_3] : memref<16x16xbf16, #tpu.memory_space<vmem>>, vector<16x16xbf16>
    %c0_4 = arith.constant 0 : index
    %c0_5 = arith.constant 0 : index
    %5 = vector.load %arg4[%c0_4, %c0_5] : memref<16x32xbf16, #tpu.memory_space<vmem>>, vector<16x32xbf16>
    %cst = arith.constant dense<0.000000e+00> : vector<16x32xf32>
    %6 = tpu.matmul %4, %5, %cst {dimension_numbers = #tpu.dot_dimension_numbers<[1], [0], [0], [1], [0, 0, 1, 1], [], []>} : vector<16x16xbf16>, vector<16x32xbf16>, vector<16x32xf32> -> vector<16x32xf32>
    %7 = arith.addf %3, %6 : vector<16x32xf32>
    %c0_6 = arith.constant 0 : index
    %c0_7 = arith.constant 0 : index
    %8 = vector.load %arg6[%c0_6, %c0_7] : memref<16x32xf32, #tpu.memory_space<vmem>>, vector<16x32xf32>
    tpu.vector_store %arg6[%c0_6, %c0_7], %7 {strides = array<i32>} : memref<16x32xf32, #tpu.memory_space<vmem>>, vector<16x32xf32>,
    %c0_i32_8 = arith.constant 0 : i32
    %9 = arith.cmpi eq, %arg2, %c0_i32_8 : i32
    %10 = arith.extui %9 : i1 to i32
    %c0_i32_9 = arith.constant 0 : i32
    %11 = arith.cmpi ne, %10, %c0_i32_9 : i32
    scf.if %11 {
      %c0_10 = arith.constant 0 : index
      %c0_11 = arith.constant 0 : index
      %12 = vector.load %arg6[%c0_10, %c0_11] : memref<16x32xf32, #tpu.memory_space<vmem>>, vector<16x32xf32>
      %c0_12 = arith.constant 0 : index
      %c0_13 = arith.constant 0 : index
      %13 = vector.load %arg5[%c0_12, %c0_13] : memref<16x32xf32, #tpu.memory_space<vmem>>, vector<16x32xf32>
      tpu.vector_store %arg5[%c0_12, %c0_13], %12 {strides = array<i32>} : memref<16x32xf32, #tpu.memory_space<vmem>>, vector<16x32xf32>,
    } else {
    }
    return
  }
  func.func @transform_0(%arg0: i32, %arg1: i32, %arg2: i32) -> (i32, i32) {
    %c0_i32 = arith.constant 0 : i32
    return %arg0, %arg2 : i32, i32
  }
  func.func @transform_1(%arg0: i32, %arg1: i32, %arg2: i32) -> (i32, i32) {
    %c0_i32 = arith.constant 0 : i32
    return %arg2, %arg1 : i32, i32
  }
  func.func @transform_2(%arg0: i32, %arg1: i32, %arg2: i32) -> (i32, i32) {
    %c0_i32 = arith.constant 0 : i32
    return %arg0, %arg1 : i32, i32
  }
}

</mosaic_0001>

<llo_original>
// kernel: mosa_forward.3
$region0: #{mosa_forward.3}
  #allocation0 [shape = 'u32[]', space=smem, size = 0x4, offset = 0x4, fixed_abs, tag = 'smem constant byte address 0x4 - core index']
  #allocation1 [shape = 'u32[72,128]{1,0:T(1,128)}', space=vmem, size = 0x9000, scoped, tag = 'internal scratch']
  #allocation2 [shape = 'f32[16,48]{1,0:T(8,128)}', space=vmem, size = 0x2000, scoped, tag = 'scratch operand']
  %s0 = inlined_call_operand.vmem [shape: bf16[16,32], index: 0, kind: input, shape index: {}]
  %s1 = inlined_call_operand.vmem [shape: bf16[32,48], index: 1, kind: input, shape index: {}]
  %s2 = inlined_call_operand.vmem [shape: bf16[16,48], index: 2, kind: output, shape index: {}]
  %s3 = sld [smem:[#allocation0]]
  $region26: #{mosa_forward.3} parent=0
    _
  %s5 = ssub.s32 1, %s3
  %s6 = scalar_select 0, %s5, %s3
  // Predicated region
  $region2: #{mosa_forward.3} parent=0 // pred_check
    _
  $region3: #{mosa_forward.3} parent=0 // pred_check_branch
    %8 = sbr.rel (0) target = $region5
  $region4: #{mosa_forward.3} parent=0 // pred_region
    _
  $region5: #{mosa_forward.3} parent=0 // pred_fallthru
    _
  // Predicated region
  $region6: #{mosa_forward.3} parent=0 // pred_check
    _
  $region7: #{mosa_forward.3} parent=0 // pred_check_branch
    %10 = sbr.rel (0) target = $region9
  $region8: #{mosa_forward.3} parent=0 // pred_region
    _
  $region9: #{mosa_forward.3} parent=0 // pred_fallthru
    _
  %p12 = scmp.eq.s32.totalorder 0, 0
  // Predicated region
  $region10: #{mosa_forward.3} parent=0 // pred_check
    %p13 = pneg %p12
  $region11: #{mosa_forward.3} parent=0 // pred_check_branch
    %15 = sbr.rel (%p13) target = $region13
  $region12: #{mosa_forward.3} parent=0 // pred_region
    %vm16 = vcmask 392192
    %17 = vst.msk [vmem:[#allocation2] sm:$0xff] %vm16, 0.0
    %18 = vst.msk [vmem:[#allocation2 + $0x8] sm:$0xff] %vm16, 0.0
  $region13: #{mosa_forward.3} parent=0 // pred_fallthru
    _
  %v19 = vld [vmem:[#allocation2] sm:$0xff]
  %v20 = vld [vmem:[#allocation2 + $0x8] sm:$0xff]
  %v21 = vld [vmem:[%s0] sm:$0xf]
  %v22 = vld [vmem:[%s0 + $0x4] sm:$0xf]
  %v23 = vld [vmem:[%s1] sm:$0xf]
  %v24 = vld [vmem:[%s1 + $0x4] sm:$0xf]
  %v25 = vld [vmem:[%s1 + $0x8] sm:$0xf]
  %v26 = vld [vmem:[%s1 + $0xc] sm:$0xf]
  %v29 = vunpack.c.l.b16 %v21
  %v30 = vunpack.c.l.b16 %v22
  %v31 = vpack.c.b16 %v30, %v29
  %v36 = vunpack.c.l.b16 %v23
  %v37 = vunpack.c.l.b16 %v24
  %v38 = vunpack.c.l.b16 %v25
  %v39 = vunpack.c.l.b16 %v26
  %v40 = vpack.c.b16 %v37, %v36
  %v41 = vpack.c.b16 %v39, %v38
  %vm44 = vcmask 261120
  %v46 = vsel %vm44, %v31, 0
  %48 = vmatpush.bf16.msra.mxu0 0
  %49 = vmatpush.bf16.msra.mxu0 0
  %50 = vmatpush.bf16.msra.mxu0 0
  %51 = vmatpush.bf16.msra.mxu0 0
  %52 = vmatpush.bf16.msra.mxu0 0
  %53 = vmatpush.bf16.msra.mxu0 0
  %54 = vmatpush.bf16.msra.mxu0 %v41
  %55 = vmatpush.bf16.msra.mxu0 %v40
  %56 = vmatmul.bf16.gmra.mxu0 %v46
  %v57 = vpop.f32.mrf.mxu0
  %v58 = vadd.f32 0.0, %v57
  %v59 = vpop.f32.mrf.mxu0
  %v60 = vadd.f32 0.0, %v59
  %61 = vdwg.mxu0
  %v62 = vadd.f32 %v19, %v58
  %v63 = vadd.f32 %v20, %v60
  %vm64 = vcmask 392192
  %65 = vst.msk [vmem:[#allocation2] sm:$0xff] %vm64, %v62
  %66 = vst.msk [vmem:[#allocation2 + $0x8] sm:$0xff] %vm64, %v63
  // Predicated region
  $region14: #{mosa_forward.3} parent=0 // pred_check
    %p67 = pneg %p12
  $region15: #{mosa_forward.3} parent=0 // pred_check_branch
    %69 = sbr.rel (%p67) target = $region17
  $region16: #{mosa_forward.3} parent=0 // pred_region
    %v70 = vld [vmem:[#allocation2] sm:$0xff]
    %v71 = vld [vmem:[#allocation2 + $0x8] sm:$0xff]
    %v72 = vpack.c.bf16 %v70, %v70
    %v73 = vpack.c.bf16 %v71, %v71
    %vm74 = vcmask 388096
    %75 = vst.msk [vmem:[%s2] sm:$0xf] %vm74, %v72
    %76 = vst.msk [vmem:[%s2 + $0x4] sm:$0xf] %vm74, %v73
  $region17: #{mosa_forward.3} parent=0 // pred_fallthru
    _
  // Predicated region
  $region18: #{mosa_forward.3} parent=0 // pred_check
    _
  $region19: #{mosa_forward.3} parent=0 // pred_check_branch
    %78 = sbr.rel (0) target = $region21
  $region20: #{mosa_forward.3} parent=0 // pred_region
    _
  $region21: #{mosa_forward.3} parent=0 // pred_fallthru
    _
  // Predicated region
  $region22: #{mosa_forward.3} parent=0 // pred_check
    _
  $region23: #{mosa_forward.3} parent=0 // pred_check_branch
    %80 = sbr.rel (0) target = $region25
  $region24: #{mosa_forward.3} parent=0 // pred_region
    _
  $region25: #{mosa_forward.3} parent=0 // pred_fallthru
    _

// kernel: mosa_forward.5
$region0: #{mosa_forward.5}
  #allocation0 [shape = 'u32[]', space=smem, size = 0x4, offset = 0x4, fixed_abs, tag = 'smem constant byte address 0x4 - core index']
  #allocation1 [shape = 'u32[72,128]{1,0:T(1,128)}', space=vmem, size = 0x9000, scoped, tag = 'internal scratch']
  #allocation2 [shape = 'f32[16,32]{1,0:T(8,128)}', space=vmem, size = 0x2000, scoped, tag = 'scratch operand']
  %s0 = inlined_call_operand.vmem [shape: bf16[16,16], index: 0, kind: input, shape index: {}]
  %s1 = inlined_call_operand.vmem [shape: bf16[16,32], index: 1, kind: input, shape index: {}]
  %s2 = inlined_call_operand.hbm [shape: f32[16,32], index: 2, kind: output, shape index: {}]
  %s3 = sld [smem:[#allocation0]]
  $region26: #{mosa_forward.5} parent=0
    _
  %s5 = ssub.s32 1, %s3
  %s6 = scalar_select 0, %s5, %s3
  $region1: #{mosa_forward.5} parent=0
    #allocation3 [shape = 'u8[8192]{0}', space=vmem, size = 0x2000, scoped, tag = 'output window, operand 0, single buffered']
    #allocation4 [shape = 's32[1]{0}', space=sflag, size = 0x4, scoped, tag = 'scoped memory for mosa_forward.5']
    %7 = vsyncpa [#allocation4], 0
    // Predicated region
    $region2: #{mosa_forward.5} parent=1 // pred_check
      _
    $region3: #{mosa_forward.5} parent=1 // pred_check_branch
      %9 = sbr.rel (0) target = $region5
    $region4: #{mosa_forward.5} parent=1 // pred_region
      _
    $region5: #{mosa_forward.5} parent=1 // pred_fallthru
      _
    // Predicated region
    $region6: #{mosa_forward.5} parent=1 // pred_check
      _
    $region7: #{mosa_forward.5} parent=1 // pred_check_branch
      %11 = sbr.rel (0) target = $region9
    $region8: #{mosa_forward.5} parent=1 // pred_region
      _
    $region9: #{mosa_forward.5} parent=1 // pred_fallthru
      _
    %p13 = scmp.eq.s32.totalorder 0, 0
    // Predicated region
    $region10: #{mosa_forward.5} parent=1 // pred_check
      %p14 = pneg %p13
    $region11: #{mosa_forward.5} parent=1 // pred_check_branch
      %16 = sbr.rel (%p14) target = $region13
    $region12: #{mosa_forward.5} parent=1 // pred_region
      %vm17 = vcmask 261120
      %18 = vst.msk [vmem:[#allocation2] sm:$0xff] %vm17, 0.0
      %19 = vst.msk [vmem:[#allocation2 + $0x8] sm:$0xff] %vm17, 0.0
    $region13: #{mosa_forward.5} parent=1 // pred_fallthru
      _
    %v20 = vld [vmem:[#allocation2] sm:$0xff]
    %v21 = vld [vmem:[#allocation2 + $0x8] sm:$0xff]
    %v22 = vld [vmem:[%s0] sm:$0xf]
    %v23 = vld [vmem:[%s0 + $0x4] sm:$0xf]
    %v24 = vld [vmem:[%s1] sm:$0xf]
    %v25 = vld [vmem:[%s1 + $0x4] sm:$0xf]
    %v28 = vunpack.c.l.b16 %v22
    %v29 = vunpack.c.l.b16 %v23
    %v30 = vpack.c.b16 %v29, %v28
    %v33 = vunpack.c.l.b16 %v24
    %v34 = vunpack.c.l.b16 %v25
    %v35 = vpack.c.b16 %v34, %v33
    %vm37 = vcmask 130048
    %v39 = vsel %vm37, %v30, 0
    %41 = vmatpush.bf16.msra.mxu0 0
    %42 = vmatpush.bf16.msra.mxu0 0
    %43 = vmatpush.bf16.msra.mxu0 0
    %44 = vmatpush.bf16.msra.mxu0 0
    %45 = vmatpush.bf16.msra.mxu0 0
    %46 = vmatpush.bf16.msra.mxu0 0
    %47 = vmatpush.bf16.msra.mxu0 0
    %48 = vmatpush.bf16.msra.mxu0 %v35
    %49 = vmatmul.bf16.gmra.mxu0 %v39
    %v50 = vpop.f32.mrf.mxu0
    %v51 = vadd.f32 0.0, %v50
    %v52 = vpop.f32.mrf.mxu0
    %v53 = vadd.f32 0.0, %v52
    %54 = vdwg.mxu0
    %v55 = vadd.f32 %v20, %v51
    %v56 = vadd.f32 %v21, %v53
    %vm57 = vcmask 261120
    %58 = vst.msk [vmem:[#allocation2] sm:$0xff] %vm57, %v55
    %59 = vst.msk [vmem:[#allocation2 + $0x8] sm:$0xff] %vm57, %v56
    // Predicated region
    $region14: #{mosa_forward.5} parent=1 // pred_check
      %p60 = pneg %p13
    $region15: #{mosa_forward.5} parent=1 // pred_check_branch
      %62 = sbr.rel (%p60) target = $region17
    $region16: #{mosa_forward.5} parent=1 // pred_region
      %v63 = vld [vmem:[#allocation2] sm:$0xff]
      %v64 = vld [vmem:[#allocation2 + $0x8] sm:$0xff]
      %65 = vst.msk [vmem:[#allocation3] sm:$0xff] %vm57, %v63
      %66 = vst.msk [vmem:[#allocation3 + $0x8] sm:$0xff] %vm57, %v64
    $region17: #{mosa_forward.5} parent=1 // pred_fallthru
      _
    // Predicated region
    $region18: #{mosa_forward.5} parent=1 // pred_check
      _
    $region19: #{mosa_forward.5} parent=1 // pred_check_branch
      %68 = sbr.rel (0) target = $region21
    $region20: #{mosa_forward.5} parent=1 // pred_region
      %70 = vsyncadd [#allocation4], 0
      %s71 = sshll.u32 [#allocation3], 4
      %s72 = int_to_ptr.vmem [resolvable:$true] %s71
      %s73 = sshll.u32 %s2, 4
      %s74 = int_to_ptr.hbm [resolvable:$true] %s73
      %79 = dma.vmem_to_hbm [thread:$0]  %s72, 256, %s74, [#allocation4], 128, 128, 8
    $region21: #{mosa_forward.5} parent=1 // pred_fallthru
      _
    // Predicated region
    $region22: #{mosa_forward.5} parent=1 // pred_check
      _
    $region23: #{mosa_forward.5} parent=1 // pred_check_branch
      %81 = sbr.rel (0) target = $region25
    $region24: #{mosa_forward.5} parent=1 // pred_region
      %83 = dma.done [#allocation4], 256
    $region25: #{mosa_forward.5} parent=1 // pred_fallthru
      _
    %84 = vsyncpa [#allocation4], 1

// kernel: mosa_forward.4
$region0: #{mosa_forward.4}
  #allocation0 [shape = 'u32[]', space=smem, size = 0x4, offset = 0x4, fixed_abs, tag = 'smem constant byte address 0x4 - core index']
  #allocation1 [shape = 'u32[72,128]{1,0:T(1,128)}', space=vmem, size = 0x9000, scoped, tag = 'internal scratch']
  #allocation2 [shape = 'f32[2,8,1]{2,1,0:T(8,128)}', space=vmem, size = 0x2000, scoped, tag = 'scratch operand']
  #allocation3 [shape = 'f32[2,8,1]{2,1,0:T(8,128)}', space=vmem, size = 0x2000, scoped, tag = 'scratch operand']
  #allocation4 [shape = 'f32[2,8,8]{2,1,0:T(8,128)}', space=vmem, size = 0x2000, scoped, tag = 'scratch operand']
  %s0 = inlined_call_operand.vmem [shape: f32[8,8], index: 0, kind: input, shape index: {}, may-alias: {0,2}]
  %s1 = inlined_call_operand.vmem [shape: f32[8,8], index: 1, kind: input, shape index: {}, may-alias: {1,3}]
  %s2 = inlined_call_operand.vmem [shape: f32[8,8], index: 2, kind: input, shape index: {}, may-alias: {0,2}]
  %s3 = inlined_call_operand.vmem [shape: f32[8,8], index: 3, kind: input, shape index: {}, may-alias: {1,3}]
  %s4 = inlined_call_operand.vmem [shape: f32[8,8], index: 4, kind: input, shape index: {}]
  %s5 = inlined_call_operand.vmem [shape: bf16[2,2,8,8], index: 5, kind: input, shape index: {}]
  %s6 = inlined_call_operand.vmem [shape: bf16[2,2,8,8], index: 6, kind: input, shape index: {}]
  %s7 = inlined_call_operand.vmem [shape: bf16[2,2,8,8], index: 7, kind: input, shape index: {}]
  %s8 = inlined_call_operand.vmem [shape: bf16[2,8,16], index: 8, kind: output, shape index: {}]
  %s9 = sld [smem:[#allocation0]]
  $region77: #{mosa_forward.4} parent=0
    _
  %s11 = ssub.s32 1, %s9
  %s12 = scalar_select 0, %s11, %s9
  loop: start=0, step=1, limit=4
  $region2: #{mosa_forward.4} parent=0 // loop_pre_header
    _
  $region3: #{mosa_forward.4} parent=0 // loop_header
    %s14 = sphi 0, %s18
    %p15 = scmp.ge.s32.totalorder %s14, 4
    %s21 = sphi 0, %s40
    %s22 = sphi 0, %s36
    %s23 = sphi 0, %s32
    %s24 = sphi 0, %s21
    %s25 = sphi 0, %s22
    %s26 = sphi 0, %s23
    %s27 = sphi 0, %s24
    %s28 = sphi 0, %s25
    %s29 = sphi 0, %s26
    %s43 = sphi 0, %s45
    %s46 = sphi 0, %s43
    %s47 = sphi 0, %s46
    %s63 = sphi 0, %s47
    %s69 = sphi 0, %s71
    %s72 = sphi 0, %s69
    %s73 = sphi 0, %s72
    %s89 = sphi 0, %s73
    %s95 = sphi 0, %s97
    %s98 = sphi 0, %s95
    %s99 = sphi 0, %s98
    %s115 = sphi 0, %s99
    %s121 = sphi 0, %s123
    %s124 = sphi 0, %s121
    %s125 = sphi 0, %s124
    %s141 = sphi 0, %s125
    %s145 = sphi 0, %s145
    %s147 = sphi 0, %s145
    %s148 = sphi 0, %s147
    %s162 = sphi 0, %s148
    %s170 = sphi 0, %s172
    %s173 = sphi 0, %s170
    %s174 = sphi 0, %s173
    %s190 = sphi 0, %s174
    %s198 = sphi 0, %s200
    %s201 = sphi 0, %s198
    %s202 = sphi 0, %s201
    %s218 = sphi 0, %s202
    %s226 = sphi 0, %s228
    %s229 = sphi 0, %s226
    %s230 = sphi 0, %s229
    %s246 = sphi 0, %s230
    %s254 = sphi 0, %s256
    %s257 = sphi 0, %s254
    %s258 = sphi 0, %s257
    %s274 = sphi 0, %s258
  $region4: #{mosa_forward.4} parent=0 // loop_header_branch
    %17 = sbr.rel (%p15) target = $region8
  $region5: #{mosa_forward.4} parent=0 // loop_body
    %s19 = ssub.s32 %s14, 1
    %s20 = ssub.s32 %s14, 2
    %s30 = sadd.s32 1, %s23
    %p31 = scmp.ge.s32.totalorder %s30, 1
    %s32 = scalar_select %p31, 0, %s30
    %s33 = sadd.s32 1, %s22
    %s34 = scalar_select %p31, %s33, %s22
    %p35 = scmp.ge.s32.totalorder %s34, 1
    %s36 = scalar_select %p35, 0, %s34
    %s37 = sadd.s32 1, %s21
    %s38 = scalar_select %p35, %s37, %s21
    %p39 = scmp.ge.s32.totalorder %s38, 2
    %s40 = scalar_select %p39, 0, %s38
    %s41 = ssub.s32 %s22, %s36
    %p42 = scmp.eq.s32.totalorder %s41, 0
    %s44 = sadd.s32 %s43, 1
    %s45 = scalar_select %p42, %s43, %s44
    %p48 = pneg %p42
    %p49 = scmp.eq.s32.totalorder %s14, 1
    %p50 = por %p48, %p49
    %p51 = scmp.ne.s32.totalorder %s43, %s46
    %p52 = scmp.eq.s32.totalorder %s14, 0
    %p53 = por %p51, %p52
    %p54 = scmp.ne.s32.totalorder %s43, %s46
    %p55 = scmp.eq.s32.totalorder %s19, 1
    %p56 = por %p54, %p55
    %p57 = scmp.ne.s32.totalorder %s46, %s47
    %p58 = scmp.eq.s32.totalorder %s19, 0
    %p59 = por %p57, %p58
    %p60 = scmp.ne.s32.totalorder %s46, %s47
    %p61 = scmp.eq.s32.totalorder %s20, 1
    %p62 = por %p60, %p61
    %p64 = scmp.ne.s32.totalorder %s47, %s63
    %p65 = scmp.eq.s32.totalorder %s20, 0
    %p66 = por %p64, %p65
    %s67 = ssub.s32 %s22, %s36
    %p68 = scmp.eq.s32.totalorder %s67, 0
    %s70 = sadd.s32 %s69, 1
    %s71 = scalar_select %p68, %s69, %s70
    %p74 = pneg %p68
    %p75 = scmp.eq.s32.totalorder %s14, 1
    %p76 = por %p74, %p75
    %p77 = scmp.ne.s32.totalorder %s69, %s72
    %p78 = scmp.eq.s32.totalorder %s14, 0
    %p79 = por %p77, %p78
    %p80 = scmp.ne.s32.totalorder %s69, %s72
    %p81 = scmp.eq.s32.totalorder %s19, 1
    %p82 = por %p80, %p81
    %p83 = scmp.ne.s32.totalorder %s72, %s73
    %p84 = scmp.eq.s32.totalorder %s19, 0
    %p85 = por %p83, %p84
    %p86 = scmp.ne.s32.totalorder %s72, %s73
    %p87 = scmp.eq.s32.totalorder %s20, 1
    %p88 = por %p86, %p87
    %p90 = scmp.ne.s32.totalorder %s73, %s89
    %p91 = scmp.eq.s32.totalorder %s20, 0
    %p92 = por %p90, %p91
    %s93 = ssub.s32 %s23, %s32
    %p94 = scmp.eq.s32.totalorder %s93, 0
    %s96 = sadd.s32 %s95, 1
    %s97 = scalar_select %p94, %s95, %s96
    %p100 = pneg %p94
    %p101 = scmp.eq.s32.totalorder %s14, 1
    %p102 = por %p100, %p101
    %p103 = scmp.ne.s32.totalorder %s95, %s98
    %p104 = scmp.eq.s32.totalorder %s14, 0
    %p105 = por %p103, %p104
    %p106 = scmp.ne.s32.totalorder %s95, %s98
    %p107 = scmp.eq.s32.totalorder %s19, 1
    %p108 = por %p106, %p107
    %p109 = scmp.ne.s32.totalorder %s98, %s99
    %p110 = scmp.eq.s32.totalorder %s19, 0
    %p111 = por %p109, %p110
    %p112 = scmp.ne.s32.totalorder %s98, %s99
    %p113 = scmp.eq.s32.totalorder %s20, 1
    %p114 = por %p112, %p113
    %p116 = scmp.ne.s32.totalorder %s99, %s115
    %p117 = scmp.eq.s32.totalorder %s20, 0
    %p118 = por %p116, %p117
    %s119 = ssub.s32 %s23, %s32
    %p120 = scmp.eq.s32.totalorder %s119, 0
    %s122 = sadd.s32 %s121, 1
    %s123 = scalar_select %p120, %s121, %s122
    %p126 = pneg %p120
    %p127 = scmp.eq.s32.totalorder %s14, 1
    %p128 = por %p126, %p127
    %p129 = scmp.ne.s32.totalorder %s121, %s124
    %p130 = scmp.eq.s32.totalorder %s14, 0
    %p131 = por %p129, %p130
    %p132 = scmp.ne.s32.totalorder %s121, %s124
    %p133 = scmp.eq.s32.totalorder %s19, 1
    %p134 = por %p132, %p133
    %p135 = scmp.ne.s32.totalorder %s124, %s125
    %p136 = scmp.eq.s32.totalorder %s19, 0
    %p137 = por %p135, %p136
    %p138 = scmp.ne.s32.totalorder %s124, %s125
    %p139 = scmp.eq.s32.totalorder %s20, 1
    %p140 = por %p138, %p139
    %p142 = scmp.ne.s32.totalorder %s125, %s141
    %p143 = scmp.eq.s32.totalorder %s20, 0
    %p144 = por %p142, %p143
    %s146 = sadd.s32 %s145, 1
    %p149 = scmp.eq.s32.totalorder %s14, 1
    %p150 = scmp.ne.s32.totalorder %s145, %s147
    %p151 = scmp.eq.s32.totalorder %s14, 0
    %p152 = por %p150, %p151
    %p153 = scmp.ne.s32.totalorder %s145, %s147
    %p154 = scmp.eq.s32.totalorder %s19, 1
    %p155 = por %p153, %p154
    %p156 = scmp.ne.s32.totalorder %s147, %s148
    %p157 = scmp.eq.s32.totalorder %s19, 0
    %p158 = por %p156, %p157
    %p159 = scmp.ne.s32.totalorder %s147, %s148
    %p160 = scmp.eq.s32.totalorder %s20, 1
    %p161 = por %p159, %p160
    %p163 = scmp.ne.s32.totalorder %s148, %s162
    %p164 = scmp.eq.s32.totalorder %s20, 0
    %p165 = por %p163, %p164
    %s166 = ssub.s32 %s21, %s40
    %s167 = ssub.s32 %s22, %s36
    %s168 = sor.u32 %s166, %s167
    %p169 = scmp.eq.s32.totalorder %s168, 0
    %s171 = sadd.s32 %s170, 1
    %s172 = scalar_select %p169, %s170, %s171
    %p175 = pneg %p169
    %p176 = scmp.eq.s32.totalorder %s14, 1
    %p177 = por %p175, %p176
    %p178 = scmp.ne.s32.totalorder %s170, %s173
    %p179 = scmp.eq.s32.totalorder %s14, 0
    %p180 = por %p178, %p179
    %p181 = scmp.ne.s32.totalorder %s170, %s173
    %p182 = scmp.eq.s32.totalorder %s19, 1
    %p183 = por %p181, %p182
    %p184 = scmp.ne.s32.totalorder %s173, %s174
    %p185 = scmp.eq.s32.totalorder %s19, 0
    %p186 = por %p184, %p185
    %p187 = scmp.ne.s32.totalorder %s173, %s174
    %p188 = scmp.eq.s32.totalorder %s20, 1
    %p189 = por %p187, %p188
    %p191 = scmp.ne.s32.totalorder %s174, %s190
    %p192 = scmp.eq.s32.totalorder %s20, 0
    %p193 = por %p191, %p192
    %s194 = ssub.s32 %s21, %s40
    %s195 = ssub.s32 %s23, %s32
    %s196 = sor.u32 %s194, %s195
    %p197 = scmp.eq.s32.totalorder %s196, 0
    %s199 = sadd.s32 %s198, 1
    %s200 = scalar_select %p197, %s198, %s199
    %p203 = pneg %p197
    %p204 = scmp.eq.s32.totalorder %s14, 1
    %p205 = por %p203, %p204
    %p206 = scmp.ne.s32.totalorder %s198, %s201
    %p207 = scmp.eq.s32.totalorder %s14, 0
    %p208 = por %p206, %p207
    %p209 = scmp.ne.s32.totalorder %s198, %s201
    %p210 = scmp.eq.s32.totalorder %s19, 1
    %p211 = por %p209, %p210
    %p212 = scmp.ne.s32.totalorder %s201, %s202
    %p213 = scmp.eq.s32.totalorder %s19, 0
    %p214 = por %p212, %p213
    %p215 = scmp.ne.s32.totalorder %s201, %s202
    %p216 = scmp.eq.s32.totalorder %s20, 1
    %p217 = por %p215, %p216
    %p219 = scmp.ne.s32.totalorder %s202, %s218
    %p220 = scmp.eq.s32.totalorder %s20, 0
    %p221 = por %p219, %p220
    %s222 = ssub.s32 %s21, %s40
    %s223 = ssub.s32 %s23, %s32
    %s224 = sor.u32 %s222, %s223
    %p225 = scmp.eq.s32.totalorder %s224, 0
    %s227 = sadd.s32 %s226, 1
    %s228 = scalar_select %p225, %s226, %s227
    %p231 = pneg %p225
    %p232 = scmp.eq.s32.totalorder %s14, 1
    %p233 = por %p231, %p232
    %p234 = scmp.ne.s32.totalorder %s226, %s229
    %p235 = scmp.eq.s32.totalorder %s14, 0
    %p236 = por %p234, %p235
    %p237 = scmp.ne.s32.totalorder %s226, %s229
    %p238 = scmp.eq.s32.totalorder %s19, 1
    %p239 = por %p237, %p238
    %p240 = scmp.ne.s32.totalorder %s229, %s230
    %p241 = scmp.eq.s32.totalorder %s19, 0
    %p242 = por %p240, %p241
    %p243 = scmp.ne.s32.totalorder %s229, %s230
    %p244 = scmp.eq.s32.totalorder %s20, 1
    %p245 = por %p243, %p244
    %p247 = scmp.ne.s32.totalorder %s230, %s246
    %p248 = scmp.eq.s32.totalorder %s20, 0
    %p249 = por %p247, %p248
    %s250 = ssub.s32 %s21, %s40
    %s251 = ssub.s32 %s22, %s36
    %s252 = sor.u32 %s250, %s251
    %p253 = scmp.eq.s32.totalorder %s252, 0
    %s255 = sadd.s32 %s254, 1
    %s256 = scalar_select %p253, %s254, %s255
    %p259 = pneg %p253
    %p260 = scmp.eq.s32.totalorder %s14, 1
    %p261 = por %p259, %p260
    %p262 = scmp.ne.s32.totalorder %s254, %s257
    %p263 = scmp.eq.s32.totalorder %s14, 0
    %p264 = por %p262, %p263
    %p265 = scmp.ne.s32.totalorder %s254, %s257
    %p266 = scmp.eq.s32.totalorder %s19, 1
    %p267 = por %p265, %p266
    %p268 = scmp.ne.s32.totalorder %s257, %s258
    %p269 = scmp.eq.s32.totalorder %s19, 0
    %p270 = por %p268, %p269
    %p271 = scmp.ne.s32.totalorder %s257, %s258
    %p272 = scmp.eq.s32.totalorder %s20, 1
    %p273 = por %p271, %p272
    %p275 = scmp.ne.s32.totalorder %s258, %s274
    %p276 = scmp.eq.s32.totalorder %s20, 0
    %p277 = por %p275, %p276
    %p278 = scmp.le.s32.totalorder 1, %s14
    %p279 = scmp.lt.s32.totalorder %s14, 3
    %p280 = pnand %p278, %p279
    %p281 = pneg %p280
    // Predicated region
    $region9: #{mosa_forward.4} parent=5 // pred_check
      _
    $region10: #{mosa_forward.4} parent=5 // pred_check_branch
      %283 = sbr.rel (%p280) target = $region12
    $region11: #{mosa_forward.4} parent=5 // pred_region
      %s284 = ssub.s32 %s14, 1
      // Predicated region
      $region13: #{mosa_forward.4} parent=11 // pred_check
        %p285 = pneg %p59
      $region14: #{mosa_forward.4} parent=11 // pred_check_branch
        %287 = sbr.rel (%p285) target = $region16
      $region15: #{mosa_forward.4} parent=11 // pred_region
        %p288 = scmp.lt.s32.totalorder %s25, 0
        %s289 = scalar_select %p288, %s25, 0
        %s290 = smul.addr %s289, 8
        %s291 = scalar_lea.vmem %s0, %s290
      $region16: #{mosa_forward.4} parent=11 // pred_fallthru
        _
      // Predicated region
      $region17: #{mosa_forward.4} parent=11 // pred_check
        %p292 = pneg %p85
      $region18: #{mosa_forward.4} parent=11 // pred_check_branch
        %294 = sbr.rel (%p292) target = $region20
      $region19: #{mosa_forward.4} parent=11 // pred_region
        %p295 = scmp.lt.s32.totalorder %s25, 0
        %s296 = scalar_select %p295, %s25, 0
        %s297 = smul.addr %s296, 8
        %s298 = scalar_lea.vmem %s1, %s297
      $region20: #{mosa_forward.4} parent=11 // pred_fallthru
        _
      // Predicated region
      $region21: #{mosa_forward.4} parent=11 // pred_check
        %p299 = pneg %p111
      $region22: #{mosa_forward.4} parent=11 // pred_check_branch
        %301 = sbr.rel (%p299) target = $region24
      $region23: #{mosa_forward.4} parent=11 // pred_region
        %p302 = scmp.lt.s32.totalorder %s26, 0
        %s303 = scalar_select %p302, %s26, 0
        %s304 = smul.addr %s303, 8
        %s305 = scalar_lea.vmem %s2, %s304
      $region24: #{mosa_forward.4} parent=11 // pred_fallthru
        _
      // Predicated region
      $region25: #{mosa_forward.4} parent=11 // pred_check
        %p306 = pneg %p137
      $region26: #{mosa_forward.4} parent=11 // pred_check_branch
        %308 = sbr.rel (%p306) target = $region28
      $region27: #{mosa_forward.4} parent=11 // pred_region
        %p309 = scmp.lt.s32.totalorder %s26, 0
        %s310 = scalar_select %p309, %s26, 0
        %s311 = smul.addr %s310, 8
        %s312 = scalar_lea.vmem %s3, %s311
      $region28: #{mosa_forward.4} parent=11 // pred_fallthru
        _
      // Predicated region
      $region29: #{mosa_forward.4} parent=11 // pred_check
        %p313 = pneg %p158
      $region30: #{mosa_forward.4} parent=11 // pred_check_branch
        %315 = sbr.rel (%p313) target = $region32
      $region31: #{mosa_forward.4} parent=11 // pred_region
        _
      $region32: #{mosa_forward.4} parent=11 // pred_fallthru
        _
    $region12: #{mosa_forward.4} parent=5 // pred_fallthru
      _
    %p316 = scmp.lt.s32.totalorder %s14, 2
    // Predicated region
    $region33: #{mosa_forward.4} parent=5 // pred_check
      %p317 = pneg %p316
    $region34: #{mosa_forward.4} parent=5 // pred_check_branch
      %319 = sbr.rel (%p317) target = $region36
    $region35: #{mosa_forward.4} parent=5 // pred_region
      // Predicated region
      $region37: #{mosa_forward.4} parent=35 // pred_check
        %p320 = pneg %p180
      $region38: #{mosa_forward.4} parent=35 // pred_check_branch
        %322 = sbr.rel (%p320) target = $region40
      $region39: #{mosa_forward.4} parent=35 // pred_region
        %p323 = scmp.lt.s32.totalorder %s21, 1
        %s324 = scalar_select %p323, %s21, 1
        %p325 = scmp.lt.s32.totalorder %s22, 0
        %s326 = scalar_select %p325, %s22, 0
        %s327 = smul.addr %s324, 2
        %s328 = sadd.s32 %s326, %s327
        %s329 = smul.addr %s328, 4
        %s330 = scalar_lea.vmem %s5, %s329
      $region40: #{mosa_forward.4} parent=35 // pred_fallthru
        _
      // Predicated region
      $region41: #{mosa_forward.4} parent=35 // pred_check
        %p331 = pneg %p208
      $region42: #{mosa_forward.4} parent=35 // pred_check_branch
        %333 = sbr.rel (%p331) target = $region44
      $region43: #{mosa_forward.4} parent=35 // pred_region
        %p334 = scmp.lt.s32.totalorder %s21, 1
        %s335 = scalar_select %p334, %s21, 1
        %p336 = scmp.lt.s32.totalorder %s23, 0
        %s337 = scalar_select %p336, %s23, 0
        %s338 = smul.addr %s335, 2
        %s339 = sadd.s32 %s337, %s338
        %s340 = smul.addr %s339, 4
        %s341 = scalar_lea.vmem %s6, %s340
      $region44: #{mosa_forward.4} parent=35 // pred_fallthru
        _
      // Predicated region
      $region45: #{mosa_forward.4} parent=35 // pred_check
        %p342 = pneg %p236
      $region46: #{mosa_forward.4} parent=35 // pred_check_branch
        %344 = sbr.rel (%p342) target = $region48
      $region47: #{mosa_forward.4} parent=35 // pred_region
        %p345 = scmp.lt.s32.totalorder %s21, 1
        %s346 = scalar_select %p345, %s21, 1
        %p347 = scmp.lt.s32.totalorder %s23, 0
        %s348 = scalar_select %p347, %s23, 0
        %s349 = smul.addr %s346, 2
        %s350 = sadd.s32 %s348, %s349
        %s351 = smul.addr %s350, 4
        %s352 = scalar_lea.vmem %s7, %s351
      $region48: #{mosa_forward.4} parent=35 // pred_fallthru
        _
    $region36: #{mosa_forward.4} parent=5 // pred_fallthru
      _
    %p353 = scmp.le.s32.totalorder 1, %s14
    %p354 = scmp.lt.s32.totalorder %s14, 3
    %p355 = pnand %p353, %p354
    %p356 = pneg %p355
    // Predicated region
    $region49: #{mosa_forward.4} parent=5 // pred_check
      _
    $region50: #{mosa_forward.4} parent=5 // pred_check_branch
      %358 = sbr.rel (%p355) target = $region52
    $region51: #{mosa_forward.4} parent=5 // pred_region
      %s359 = ssub.s32 %s14, 1
      %p360 = scmp.lt.s32.totalorder %s25, 0
      %s361 = scalar_select %p360, %s25, 0
      %s362 = smul.addr %s361, 8
      %s363 = scalar_lea.vmem %s0, %s362
      %p364 = pneg %p59
      %p365 = pneg %p56
      %p366 = scmp.lt.s32.totalorder %s25, 0
      %s367 = scalar_select %p366, %s25, 0
      %s368 = smul.addr %s367, 8
      %s369 = scalar_lea.vmem %s1, %s368
      %p370 = pneg %p85
      %p371 = pneg %p82
      %p372 = scmp.lt.s32.totalorder %s26, 0
      %s373 = scalar_select %p372, %s26, 0
      %s374 = smul.addr %s373, 8
      %s375 = scalar_lea.vmem %s2, %s374
      %p376 = pneg %p111
      %p377 = pneg %p108
      %p378 = scmp.lt.s32.totalorder %s26, 0
      %s379 = scalar_select %p378, %s26, 0
      %s380 = smul.addr %s379, 8
      %s381 = scalar_lea.vmem %s3, %s380
      %p382 = pneg %p137
      %p383 = pneg %p134
      %p384 = pneg %p158
      %p385 = pneg %p155
      %p386 = scmp.lt.s32.totalorder %s24, 1
      %s387 = scalar_select %p386, %s24, 1
      %p388 = scmp.lt.s32.totalorder %s25, 0
      %s389 = scalar_select %p388, %s25, 0
      %s390 = smul.addr %s387, 2
      %s391 = sadd.s32 %s389, %s390
      %s392 = smul.addr %s391, 4
      %s393 = scalar_lea.vmem %s5, %s392
      %p394 = pneg %p186
      %p395 = pneg %p183
      %p396 = scmp.lt.s32.totalorder %s24, 1
      %s397 = scalar_select %p396, %s24, 1
      %p398 = scmp.lt.s32.totalorder %s26, 0
      %s399 = scalar_select %p398, %s26, 0
      %s400 = smul.addr %s397, 2
      %s401 = sadd.s32 %s399, %s400
      %s402 = smul.addr %s401, 4
      %s403 = scalar_lea.vmem %s6, %s402
      %p404 = pneg %p214
      %p405 = pneg %p211
      %p406 = scmp.lt.s32.totalorder %s24, 1
      %s407 = scalar_select %p406, %s24, 1
      %p408 = scmp.lt.s32.totalorder %s26, 0
      %s409 = scalar_select %p408, %s26, 0
      %s410 = smul.addr %s407, 2
      %s411 = sadd.s32 %s409, %s410
      %s412 = smul.addr %s411, 4
      %s413 = scalar_lea.vmem %s7, %s412
      %p414 = pneg %p242
      %p415 = pneg %p239
      %p416 = pneg %p270
      %p417 = pneg %p267
      %p418 = scmp.lt.s32.totalorder %s24, 1
      %s419 = scalar_select %p418, %s24, 1
      %p420 = scmp.lt.s32.totalorder %s25, 0
      %s421 = scalar_select %p420, %s25, 0
      %s422 = sadd.s32 %s421, %s419
      %s423 = smul.addr %s422, 4
      %s424 = scalar_lea.vmem %s8, %s423
      %p425 = scmp.lt.s32.totalorder %s25, 0
      %s426 = scalar_select %p425, %s25, 0
      %s427 = smul.addr %s426, 8
      %s428 = scalar_lea.vmem %s0, %s427
      %p429 = scmp.lt.s32.totalorder %s25, 0
      %s430 = scalar_select %p429, %s25, 0
      %s431 = smul.addr %s430, 8
      %s432 = scalar_lea.vmem %s1, %s431
      %p433 = scmp.lt.s32.totalorder %s26, 0
      %s434 = scalar_select %p433, %s26, 0
      %s435 = smul.addr %s434, 8
      %s436 = scalar_lea.vmem %s2, %s435
      %p437 = scmp.lt.s32.totalorder %s26, 0
      %s438 = scalar_select %p437, %s26, 0
      %s439 = smul.addr %s438, 8
      %s440 = scalar_lea.vmem %s3, %s439
      %p441 = scmp.lt.s32.totalorder %s24, 1
      %s442 = scalar_select %p441, %s24, 1
      %p443 = scmp.lt.s32.totalorder %s25, 0
      %s444 = scalar_select %p443, %s25, 0
      %s445 = smul.addr %s442, 2
      %s446 = sadd.s32 %s444, %s445
      %s447 = smul.addr %s446, 4
      %s448 = scalar_lea.vmem %s5, %s447
      %p449 = scmp.lt.s32.totalorder %s24, 1
      %s450 = scalar_select %p449, %s24, 1
      %p451 = scmp.lt.s32.totalorder %s26, 0
      %s452 = scalar_select %p451, %s26, 0
      %s453 = smul.addr %s450, 2
      %s454 = sadd.s32 %s452, %s453
      %s455 = smul.addr %s454, 4
      %s456 = scalar_lea.vmem %s6, %s455
      %p457 = scmp.lt.s32.totalorder %s24, 1
      %s458 = scalar_select %p457, %s24, 1
      %p459 = scmp.lt.s32.totalorder %s26, 0
      %s460 = scalar_select %p459, %s26, 0
      %s461 = smul.addr %s458, 2
      %s462 = sadd.s32 %s460, %s461
      %s463 = smul.addr %s462, 4
      %s464 = scalar_lea.vmem %s7, %s463
      %p465 = scmp.lt.s32.totalorder %s24, 1
      %s466 = scalar_select %p465, %s24, 1
      %p467 = scmp.lt.s32.totalorder %s25, 0
      %s468 = scalar_select %p467, %s25, 0
      %s469 = sadd.s32 %s468, %s466
      %s470 = smul.addr %s469, 4
      %s471 = scalar_lea.vmem %s8, %s470
      %p473 = scmp.eq.s32.totalorder %s26, 0
      // Predicated region
      $region53: #{mosa_forward.4} parent=51 // pred_check
        %p474 = pneg %p473
      $region54: #{mosa_forward.4} parent=51 // pred_check_branch
        %476 = sbr.rel (%p474) target = $region56
      $region55: #{mosa_forward.4} parent=51 // pred_region
        %vm477 = vcmask 7168
        %478 = vst.msk [vmem:[#allocation2] sm:$0xff] %vm477, -1e+30
        %479 = vst.msk [vmem:[#allocation2 + $0x8] sm:$0xff] %vm477, -1e+30
        %480 = vst.msk [vmem:[#allocation3] sm:$0xff] %vm477, 0.0
        %481 = vst.msk [vmem:[#allocation3 + $0x8] sm:$0xff] %vm477, 0.0
        %vm482 = vcmask 64512
        %483 = vst.msk [vmem:[#allocation4] sm:$0xff] %vm482, 0.0
        %484 = vst.msk [vmem:[#allocation4 + $0x8] sm:$0xff] %vm482, 0.0
      $region56: #{mosa_forward.4} parent=51 // pred_fallthru
        _
      %s485 = smul.u32 %s26, 8
      %s486 = smul.u32 %s25, 8
      %s487 = sadd.s32 %s486, 7
      %p488 = scmp.le.s32.totalorder %s485, %s487
      // Predicated region
      $region57: #{mosa_forward.4} parent=51 // pred_check
        %p489 = pneg %p488
      $region58: #{mosa_forward.4} parent=51 // pred_check_branch
        %491 = sbr.rel (%p489) target = $region60
      $region59: #{mosa_forward.4} parent=51 // pred_region
        %v492 = vld [vmem:[%s448] sm:$0xf]
        %v493 = vld [vmem:[%s448 + $0x4] sm:$0xf]
        %v494 = vunpack.c.l.bf16 %v492
        %v495 = vunpack.c.l.bf16 %v493
        %v496 = vld [vmem:[%s456] sm:$0xf]
        %v497 = vld [vmem:[%s456 + $0x4] sm:$0xf]
        %v498 = vunpack.c.l.bf16 %v496
        %v499 = vunpack.c.l.bf16 %v497
        %v500 = vld [vmem:[%s464] sm:$0xf]
        %v501 = vld [vmem:[%s464 + $0x4] sm:$0xf]
        %v502 = vld [vmem:[%s4] sm:$0xff]
        %v503 = vld [vmem:[%s428] sm:$0xff]
        %v504 = vld [vmem:[%s432] sm:$0xff]
        %vm505 = vcmask 64512
        %v507 = vsel %vm505, %v494, 0
        %509 = vmatpush.msra.mxu0 0.0
        %510 = vmatpush.msra.mxu0 0.0
        %511 = vmatpush.msra.mxu0 0.0
        %512 = vmatpush.msra.mxu0 0.0
        %513 = vmatpush.msra.mxu0 0.0
        %514 = vmatpush.msra.mxu0 0.0
        %515 = vmatpush.msra.mxu0 0.0
        %516 = vmatpush.msra.mxu0 0.0
        %517 = vmatpush.msra.mxu0 0.0
        %518 = vmatpush.msra.mxu0 0.0
        %519 = vmatpush.msra.mxu0 0.0
        %520 = vmatpush.msra.mxu0 0.0
        %521 = vmatpush.msra.mxu0 0.0
        %522 = vmatpush.msra.mxu0 0.0
        %523 = vmatpush.msra.mxu0 0.0
        %524 = vmatpush.msra.mxu0 %v502
        %525 = vmatmul.f32.gmra.mxu0 %v507
        %v526 = vpop.f32.mrf.mxu0
        %v527 = vadd.f32 0.0, %v526
        %528 = vdwg.mxu0
        %v530 = vsel %vm505, %v495, 0
        %532 = vmatpush.msra.mxu0 0.0
        %533 = vmatpush.msra.mxu0 0.0
        %534 = vmatpush.msra.mxu0 0.0
        %535 = vmatpush.msra.mxu0 0.0
        %536 = vmatpush.msra.mxu0 0.0
        %537 = vmatpush.msra.mxu0 0.0
        %538 = vmatpush.msra.mxu0 0.0
        %539 = vmatpush.msra.mxu0 0.0
        %540 = vmatpush.msra.mxu0 0.0
        %541 = vmatpush.msra.mxu0 0.0
        %542 = vmatpush.msra.mxu0 0.0
        %543 = vmatpush.msra.mxu0 0.0
        %544 = vmatpush.msra.mxu0 0.0
        %545 = vmatpush.msra.mxu0 0.0
        %546 = vmatpush.msra.mxu0 0.0
        %547 = vmatpush.msra.mxu0 %v502
        %548 = vmatmul.f32.gmra.mxu0 %v530
        %v549 = vpop.f32.mrf.mxu0
        %v550 = vadd.f32 0.0, %v549
        %551 = vdwg.mxu0
        %v552 = vmul.f32 %v494, %v503
        %v553 = vmul.f32 %v495, %v503
        %v554 = vmul.f32 %v527, %v504
        %v555 = vmul.f32 %v550, %v504
        %v556 = vadd.f32 %v552, %v554
        %v557 = vadd.f32 %v553, %v555
        %v558 = vld [vmem:[%s436] sm:$0xff]
        %v559 = vld [vmem:[%s440] sm:$0xff]
        %v561 = vsel %vm505, %v498, 0
        %563 = vmatpush.msra.mxu0 0.0
        %564 = vmatpush.msra.mxu0 0.0
        %565 = vmatpush.msra.mxu0 0.0
        %566 = vmatpush.msra.mxu0 0.0
        %567 = vmatpush.msra.mxu0 0.0
        %568 = vmatpush.msra.mxu0 0.0
        %569 = vmatpush.msra.mxu0 0.0
        %570 = vmatpush.msra.mxu0 0.0
        %571 = vmatpush.msra.mxu0 0.0
        %572 = vmatpush.msra.mxu0 0.0
        %573 = vmatpush.msra.mxu0 0.0
        %574 = vmatpush.msra.mxu0 0.0
        %575 = vmatpush.msra.mxu0 0.0
        %576 = vmatpush.msra.mxu0 0.0
        %577 = vmatpush.msra.mxu0 0.0
        %578 = vmatpush.msra.mxu0 %v502
        %579 = vmatmul.f32.gmra.mxu0 %v561
        %v580 = vpop.f32.mrf.mxu0
        %v581 = vadd.f32 0.0, %v580
        %582 = vdwg.mxu0
        %v584 = vsel %vm505, %v499, 0
        %586 = vmatpush.msra.mxu0 0.0
        %587 = vmatpush.msra.mxu0 0.0
        %588 = vmatpush.msra.mxu0 0.0
        %589 = vmatpush.msra.mxu0 0.0
        %590 = vmatpush.msra.mxu0 0.0
        %591 = vmatpush.msra.mxu0 0.0
        %592 = vmatpush.msra.mxu0 0.0
        %593 = vmatpush.msra.mxu0 0.0
        %594 = vmatpush.msra.mxu0 0.0
        %595 = vmatpush.msra.mxu0 0.0
        %596 = vmatpush.msra.mxu0 0.0
        %597 = vmatpush.msra.mxu0 0.0
        %598 = vmatpush.msra.mxu0 0.0
        %599 = vmatpush.msra.mxu0 0.0
        %600 = vmatpush.msra.mxu0 0.0
        %601 = vmatpush.msra.mxu0 %v502
        %602 = vmatmul.f32.gmra.mxu0 %v584
        %v603 = vpop.f32.mrf.mxu0
        %v604 = vadd.f32 0.0, %v603
        %605 = vdwg.mxu0
        %v606 = vmul.f32 %v498, %v558
        %v607 = vmul.f32 %v499, %v558
        %v608 = vmul.f32 %v581, %v559
        %v609 = vmul.f32 %v604, %v559
        %v610 = vadd.f32 %v606, %v608
        %v611 = vadd.f32 %v607, %v609
        %v612 = vmul.f32 %v556, 0.35355338
        %v613 = vmul.f32 %v557, 0.35355338
        %v614 = vpack.c.bf16 %v612, %v612
        %v615 = vpack.c.bf16 %v613, %v613
        %v616 = vpack.c.bf16 %v610, %v610
        %v617 = vpack.c.bf16 %v611, %v611
        %v619 = vsel %vm505, %v614, 0
        %v622 = vsel %vm505, %v616, 0
        %624 = vmatpush.bf16.xpose.msra.mxu0 0
        %625 = vmatpush.bf16.xpose.msra.mxu0 0
        %626 = vmatpush.bf16.xpose.msra.mxu0 0
        %627 = vmatpush.bf16.xpose.msra.mxu0 0
        %628 = vmatpush.bf16.xpose.msra.mxu0 0
        %629 = vmatpush.bf16.xpose.msra.mxu0 0
        %630 = vmatpush.bf16.xpose.msra.mxu0 0
        %631 = vmatpush.bf16.xpose.msra.mxu0 %v622
        %632 = vmatmul.bf16.gmra.mxu0 %v619
        %v633 = vpop.f32.mrf.mxu0
        %v634 = vadd.f32 0.0, %v633
        %v635 = vpop.f32.mrf.mxu0
        %636 = vdwg.mxu0
        %v638 = vsel %vm505, %v615, 0
        %v641 = vsel %vm505, %v617, 0
        %643 = vmatpush.bf16.xpose.msra.mxu0 0
        %644 = vmatpush.bf16.xpose.msra.mxu0 0
        %645 = vmatpush.bf16.xpose.msra.mxu0 0
        %646 = vmatpush.bf16.xpose.msra.mxu0 0
        %647 = vmatpush.bf16.xpose.msra.mxu0 0
        %648 = vmatpush.bf16.xpose.msra.mxu0 0
        %649 = vmatpush.bf16.xpose.msra.mxu0 0
        %650 = vmatpush.bf16.xpose.msra.mxu0 %v641
        %651 = vmatmul.bf16.gmra.mxu0 %v638
        %v652 = vpop.f32.mrf.mxu0
        %v653 = vadd.f32 0.0, %v652
        %v654 = vpop.f32.mrf.mxu0
        %655 = vdwg.mxu0
        %v656 = vlaneseq
        %v657 = vshrl.u32 %v656, 7
        %v658 = vstv %s486
        %v659 = vadd.s32 %v658, %v657
        %v660 = vlaneseq
        %v661 = vand.u32 %v660, 127
        %v662 = vstv %s485
        %v663 = vadd.s32 %v662, %v661
        %vm664 = vcmp.le.s32.totalorder %v663, %v659
        %v665 = vsel %vm664, %v634, -1e+30
        %v666 = vsel %vm664, %v653, -1e+30
        %v667 = vld [vmem:[#allocation2] sm:$0xff]
        %v668 = vld [vmem:[#allocation2 + $0x8] sm:$0xff]
        %v669 = vsel %vm505, %v665, -inf
        %670 = vmax.xlane.f32.xlu0 %v669
        %v671 = vpop.xlane.xlu0 %670
        %v672 = vsel %vm505, %v666, -inf
        %673 = vmax.xlane.f32.xlu0 %v672
        %v674 = vpop.xlane.xlu0 %673
        %v675 = vmax.f32 %v667, %v671
        %v676 = vmax.f32 %v668, %v674
        %v677 = vsub.f32 %v667, %v675
        %v678 = vsub.f32 %v668, %v676
        %v679 = vmul.f32 %v677, 1.442695
        %v680 = vpow.pop %v679
        %v681 = vmul.f32 %v678, 1.442695
        %v682 = vpow.pop %v681
        %684 = vset.pattern.permute.xlu0 0
        %685 = vperm.xlu0 %684, %v675
        %v686 = vpop.permute.xlu0 %685
        %689 = vset.pattern.permute.xlu0 0
        %690 = vperm.xlu0 %689, %v676
        %v691 = vpop.permute.xlu0 %690
        %v693 = vsub.f32 %v665, %v686
        %v694 = vsub.f32 %v666, %v691
        %v695 = vmul.f32 %v693, 1.442695
        %v696 = vpow.pop %v695
        %v697 = vmul.f32 %v694, 1.442695
        %v698 = vpow.pop %v697
        %v699 = vld [vmem:[#allocation3] sm:$0xff]
        %v700 = vld [vmem:[#allocation3 + $0x8] sm:$0xff]
        %v701 = vmul.f32 %v680, %v699
        %v702 = vmul.f32 %v682, %v700
        %v703 = vsel %vm505, %v696, 0.0
        %704 = vadd.xlane.f32.xlu0 %v703
        %v705 = vpop.xlane.xlu0 %704
        %v706 = vsel %vm505, %v698, 0.0
        %707 = vadd.xlane.f32.xlu0 %v706
        %v708 = vpop.xlane.xlu0 %707
        %v709 = vadd.f32 %v701, %v705
        %v710 = vadd.f32 %v702, %v708
        %vm711 = vcmask 7168
        %712 = vst.msk [vmem:[#allocation3] sm:$0xff] %vm711, %v709
        %713 = vst.msk [vmem:[#allocation3 + $0x8] sm:$0xff] %vm711, %v710
        %v714 = vld [vmem:[#allocation4] sm:$0xff]
        %v715 = vld [vmem:[#allocation4 + $0x8] sm:$0xff]
        %717 = vset.pattern.permute.xlu0 0
        %718 = vperm.xlu0 %717, %v680
        %v719 = vpop.permute.xlu0 %718
        %722 = vset.pattern.permute.xlu0 0
        %723 = vperm.xlu0 %722, %v682
        %v724 = vpop.permute.xlu0 %723
        %v726 = vmul.f32 %v719, %v714
        %v727 = vmul.f32 %v724, %v715
        %v728 = vpack.c.bf16 %v696, %v696
        %v729 = vpack.c.bf16 %v698, %v698
        %v731 = vsel %vm505, %v728, 0
        %vm733 = vcmask 1043456
        %v735 = vsel %vm733, %v500, 0
        %737 = vmatpush.bf16.msra.mxu0 0
        %738 = vmatpush.bf16.msra.mxu0 0
        %739 = vmatpush.bf16.msra.mxu0 0
        %740 = vmatpush.bf16.msra.mxu0 0
        %741 = vmatpush.bf16.msra.mxu0 0
        %742 = vmatpush.bf16.msra.mxu0 0
        %743 = vmatpush.bf16.msra.mxu0 0
        %744 = vmatpush.bf16.msra.mxu0 %v735
        %745 = vmatmul.bf16.gmra.mxu0 %v731
        %v746 = vpop.f32.mrf.mxu0
        %v747 = vadd.f32 0.0, %v746
        %v748 = vpop.f32.mrf.mxu0
        %749 = vdwg.mxu0
        %v751 = vsel %vm505, %v729, 0
        %v754 = vsel %vm733, %v501, 0
        %756 = vmatpush.bf16.msra.mxu0 0
        %757 = vmatpush.bf16.msra.mxu0 0
        %758 = vmatpush.bf16.msra.mxu0 0
        %759 = vmatpush.bf16.msra.mxu0 0
        %760 = vmatpush.bf16.msra.mxu0 0
        %761 = vmatpush.bf16.msra.mxu0 0
        %762 = vmatpush.bf16.msra.mxu0 0
        %763 = vmatpush.bf16.msra.mxu0 %v754
        %764 = vmatmul.bf16.gmra.mxu0 %v751
        %v765 = vpop.f32.mrf.mxu0
        %v766 = vadd.f32 0.0, %v765
        %v767 = vpop.f32.mrf.mxu0
        %768 = vdwg.mxu0
        %v769 = vadd.f32 %v726, %v747
        %v770 = vadd.f32 %v727, %v766
        %771 = vst.msk [vmem:[#allocation4] sm:$0xff] %vm505, %v769
        %772 = vst.msk [vmem:[#allocation4 + $0x8] sm:$0xff] %vm505, %v770
        %773 = vst.msk [vmem:[#allocation2] sm:$0xff] %vm711, %v675
        %774 = vst.msk [vmem:[#allocation2 + $0x8] sm:$0xff] %vm711, %v676
      $region60: #{mosa_forward.4} parent=51 // pred_fallthru
        _
      // Predicated region
      $region61: #{mosa_forward.4} parent=51 // pred_check
        %p775 = pneg %p473
      $region62: #{mosa_forward.4} parent=51 // pred_check_branch
        %777 = sbr.rel (%p775) target = $region64
      $region63: #{mosa_forward.4} parent=51 // pred_region
        %v778 = vld [vmem:[#allocation4] sm:$0xff]
        %v779 = vld [vmem:[#allocation4 + $0x8] sm:$0xff]
        %v780 = vld [vmem:[#allocation3] sm:$0xff]
        %v781 = vld [vmem:[#allocation3 + $0x8] sm:$0xff]
        %v782 = vrcp.pop %v780
        %v783 = vrcp.pop %v781
        %785 = vset.pattern.permute.xlu0 0
        %786 = vperm.xlu0 %785, %v782
        %v787 = vpop.permute.xlu0 %786
        %790 = vset.pattern.permute.xlu0 0
        %791 = vperm.xlu0 %790, %v783
        %v792 = vpop.permute.xlu0 %791
        %v794 = vmul.f32 %v778, %v787
        %v795 = vmul.f32 %v779, %v792
        %v796 = vpack.c.bf16 %v794, %v794
        %vm797 = vcmask 60416
        %798 = vst.msk [vmem:[%s471] sm:$0xf] %vm797, %v796
        %v799 = vpack.c.bf16 %v795, %v795
        %801 = vrot.lane.b32.xlu0 %v799, 8
        %v802 = vpop.permute.xlu0 %801
        %vm804 = vcmask 126016
        %805 = vst.msk [vmem:[%s471] sm:$0xf] %vm804, %v802
      $region64: #{mosa_forward.4} parent=51 // pred_fallthru
        _
      %p806 = scmp.lt.s32.totalorder %s24, 1
      %s807 = scalar_select %p806, %s24, 1
      %p808 = scmp.lt.s32.totalorder %s25, 0
      %s809 = scalar_select %p808, %s25, 0
      %s810 = sadd.s32 %s809, %s807
      %s811 = smul.addr %s810, 4
      %s812 = scalar_lea.vmem %s8, %s811
      // Predicated region
      $region65: #{mosa_forward.4} parent=51 // pred_check
        %p813 = pneg %p267
      $region66: #{mosa_forward.4} parent=51 // pred_check_branch
        %815 = sbr.rel (%p813) target = $region68
      $region67: #{mosa_forward.4} parent=51 // pred_region
        _
      $region68: #{mosa_forward.4} parent=51 // pred_fallthru
        _
    $region52: #{mosa_forward.4} parent=5 // pred_fallthru
      _
    %p816 = scmp.le.s32.totalorder 2, %s14
    // Predicated region
    $region69: #{mosa_forward.4} parent=5 // pred_check
      %p817 = pneg %p816
    $region70: #{mosa_forward.4} parent=5 // pred_check_branch
      %819 = sbr.rel (%p817) target = $region72
    $region71: #{mosa_forward.4} parent=5 // pred_region
      %s820 = ssub.s32 %s14, 2
      // Predicated region
      $region73: #{mosa_forward.4} parent=71 // pred_check
        %p821 = pneg %p273
      $region74: #{mosa_forward.4} parent=71 // pred_check_branch
        %823 = sbr.rel (%p821) target = $region76
      $region75: #{mosa_forward.4} parent=71 // pred_region
        %p824 = scmp.lt.s32.totalorder %s27, 1
        %s825 = scalar_select %p824, %s27, 1
        %p826 = scmp.lt.s32.totalorder %s28, 0
        %s827 = scalar_select %p826, %s28, 0
        %s828 = sadd.s32 %s827, %s825
        %s829 = smul.addr %s828, 4
        %s830 = scalar_lea.vmem %s8, %s829
      $region76: #{mosa_forward.4} parent=71 // pred_fallthru
        _
    $region72: #{mosa_forward.4} parent=5 // pred_fallthru
      _
  $region6: #{mosa_forward.4} parent=0 // loop_footer
    %s18 = sadd.s32 1, %s14
  $region7: #{mosa_forward.4} parent=0 // loop_footer_branch
    %13 = sbr.rel target = $region3
  $region8: #{mosa_forward.4} parent=0 // loop_exit
    _

</llo_original>
